<compile_context>
chip_gen: v7x
topology: tpu7x:2x2x1
jax: 0.10.0
libtpu: 0.0.40
codegen_flags: <defaults>
</compile_context>

<pallas_src>
import jax
import jax.numpy as jnp
from jax.experimental import pallas as pl
from jax.experimental.pallas import tpu as pltpu


def _make_mlp_kernel(compute_dtype, precision):
    """Returns the fused feature-major MLP kernel for the given activation dtype."""

    def _sigmoid(v):
        # sigmoid(x) == 0.5 * tanh(0.5 * x) + 0.5 : single EUP op + two VPU ops.
        half = jnp.asarray(0.5, v.dtype)
        return half * jnp.tanh(half * v) + half

    def kernel(x_ref, w1_ref, b1_ref, w2t_ref, b2_ref, w3t_ref, b3_ref,
               w4_ref, b4_ref, o_ref):
        x = x_ref[...]                                            # (1, TB), batch on lanes

        # Layer 1: 1 -> 30.  K = 1 => VPU broadcast outer product (no near-empty MXU pass).
        h = _sigmoid(w1_ref[...] * x + b1_ref[...])               # (30, TB)

        # Layer 2: 30 -> 50 on the MXU, f32 accumulate.
        z = jnp.dot(w2t_ref[...], h, preferred_element_type=jnp.float32,
                    precision=precision)
        h = _sigmoid((z + b2_ref[...].astype(jnp.float32)).astype(compute_dtype))

        # Layer 3: 50 -> 50 on the MXU.
        z = jnp.dot(w3t_ref[...], h, preferred_element_type=jnp.float32,
                    precision=precision)
        h = _sigmoid((z + b3_ref[...].astype(jnp.float32)).astype(compute_dtype))

        # Layer 4: 50 -> 1.  N = 1 => VPU multiply + cross-sublane (XLU) reduce, f32.
        prod = w4_ref[...].astype(jnp.float32) * h.astype(jnp.float32)
        out = jnp.sum(prod, axis=0, keepdims=True) + b4_ref[...].astype(jnp.float32)
        o_ref[...] = out.astype(o_ref.dtype)                      # (1, TB), lane-dense store

    return kernel


def _num_tensorcores():
    """Best-effort TensorCore count usable by a 'parallel' grid axis."""
    try:
        kind = jax.devices()[0].device_kind.lower()
    except Exception:
        return 1
    # Megacore (v4 / v5p) and dual-TC (v7x) parts benefit from >= 2 grid steps.
    if any(tag in kind for tag in ("v4", "v5p", "v7", "7x")):
        return 2
    return 1


def _pick_batch_tiling(batch, max_batch_tile, min_steps):
    """Pick (batch_tile, grid_steps).

    The batch is padded only to a multiple of 128 lanes (never a whole extra tile
    of garbage work), the tile stays <= max_batch_tile, and when the batch allows
    it the grid has at least `min_steps` steps so multi-TC parts keep both cores busy.
    """
    units = -(-batch // 128)                       # 128-lane groups after lane padding
    max_units = max(1, max_batch_tile // 128)
    steps = max(min(min_steps, units), -(-units // max_units))
    tile_units = -(-units // steps)                # <= max_units by construction
    steps = -(-units // tile_units)
    return 128 * tile_units, steps


def nn_forward(x, params, *, max_batch_tile=4096, compute_dtype=jnp.float32):
    """x: (B, 1) batch-major (torch layout). Returns (B, 1) f32."""
    B = x.shape[0]
    cdt = jnp.dtype(compute_dtype)
    (w1, b1), (w2, b2), (w3, b3), (w4, b4) = params   # w: (in, out), b: (1, out)

    # Feature-major parameters. Each is a separate VMEM-resident operand (constant
    # index_map) so there is no per-step unaligned extraction from a packed buffer.
    w1c = w1.T.astype(cdt)                 # (30, 1)
    b1c = b1.reshape(30, 1).astype(cdt)    # (30, 1)
    w2t = w2.T.astype(cdt)                 # (50, 30)
    b2c = b2.reshape(50, 1).astype(cdt)    # (50, 1)
    w3t = w3.T.astype(cdt)                 # (50, 50)
    b3c = b3.reshape(50, 1).astype(cdt)    # (50, 1)
    w4c = w4.astype(cdt)                   # (50, 1)
    b4c = b4.reshape(1, 1).astype(cdt)     # (1, 1)

    TB, steps = _pick_batch_tiling(B, max_batch_tile, _num_tensorcores())
    Bp = TB * steps

    # (B, 1) -> (1, B) is a metadata-only reshape; pad lanes only when needed.
    xT = x.reshape(1, B).astype(cdt)
    if Bp != B:
        xT = jnp.pad(xT, ((0, 0), (0, Bp - B)))

    precision = (jax.lax.Precision.HIGHEST if cdt == jnp.float32
                 else jax.lax.Precision.DEFAULT)
    kernel = _make_mlp_kernel(cdt, precision)
    const = lambda i: (0, 0)

    outT = pl.pallas_call(
        kernel,
        out_shape=jax.ShapeDtypeStruct((1, Bp), jnp.float32),
        grid=(steps,),
        in_specs=[
            pl.BlockSpec((1, TB), lambda i: (0, i)),   # x tile (pipelined)
            pl.BlockSpec((30, 1), const),              # w1
            pl.BlockSpec((30, 1), const),              # b1
            pl.BlockSpec((50, 30), const),             # W2^T
            pl.BlockSpec((50, 1), const),              # b2
            pl.BlockSpec((50, 50), const),             # W3^T
            pl.BlockSpec((50, 1), const),              # b3
            pl.BlockSpec((50, 1), const),              # w4
            pl.BlockSpec((1, 1), const),               # b4
        ],
        out_specs=pl.BlockSpec((1, TB), lambda i: (0, i)),       # lane-dense output tile
        compiler_params=pltpu.CompilerParams(
            dimension_semantics=("parallel",)),                  # shard batch grid across TCs
    )(xT, w1c, b1c, w2t, b2c, w3t, b3c, w4c, b4c)

    return outT[:, :B].reshape(B, 1)                             # back to (B, 1)


def init_params(key):
    """Deterministic init matching torch.nn.Linear default (uniform(-1/sqrt(fan_in), +))."""
    dims = [(1, 30), (30, 50), (50, 50), (50, 1)]
    params = []
    for (fan_in, fan_out) in dims:
        key, kw, kb = jax.random.split(key, 3)
        bound = 1.0 / (fan_in ** 0.5)
        w = jax.random.uniform(kw, (fan_in, fan_out), jnp.float32, -bound, bound)
        b = jax.random.uniform(kb, (1, fan_out), jnp.float32, -bound, bound)
        params.append((w, b))
    return params


def nn_ref(x, params):
    h = x
    for i, (w, b) in enumerate(params):
        h = h @ w + b
        if i < len(params) - 1:
            h = jax.nn.sigmoid(h)
    return h


if __name__ == "__main__":
    key = jax.random.PRNGKey(0)
    key, kx = jax.random.split(key)
    params = init_params(key)

    # f32 exact path (runs on all generations), two batch sizes to exercise the
    # lane-padding / tiling logic.
    for B in (8, 300):
        x = jax.random.normal(jax.random.fold_in(kx, B), (B, 1), jnp.float32)
        out = jax.block_until_ready(nn_forward(x, params))
        ref = nn_ref(x, params)
        assert out.shape == (B, 1)
        assert jnp.allclose(out, ref, atol=1e-5, rtol=1e-5), f"f32 mismatch vs reference (B={B})"

    # bf16 activation fast path: only on bf16-capable VPU/EUP generations (v6e / v7x),
    # with a loosened tolerance (the exact-precision contract is the f32 path above).
    try:
        kind = jax.devices()[0].device_kind.lower()
    except Exception:
        kind = ""
    if any(tag in kind for tag in ("v6", "v7", "7x")):
        x = jax.random.normal(kx, (8, 1), jnp.float32)
        out_bf16 = jax.block_until_ready(
            nn_forward(x, params, compute_dtype=jnp.bfloat16))
        ref = nn_ref(x, params)
        assert jnp.allclose(out_bf16, ref, atol=1e-1, rtol=1e-1), "bf16 fast path mismatch"

    print("KERNEL_OK")
</pallas_src>

<mosaic_0001>
module attributes {stable_mosaic.version = 11 : i64} {
  func.func @kernel(%arg0: i32, %arg1: memref<1x128xf32, #tpu.memory_space<vmem>>, %arg2: memref<30x1xf32, #tpu.memory_space<vmem>>, %arg3: memref<30x1xf32, #tpu.memory_space<vmem>>, %arg4: memref<50x30xf32, #tpu.memory_space<vmem>>, %arg5: memref<50x1xf32, #tpu.memory_space<vmem>>, %arg6: memref<50x50xf32, #tpu.memory_space<vmem>>, %arg7: memref<50x1xf32, #tpu.memory_space<vmem>>, %arg8: memref<50x1xf32, #tpu.memory_space<vmem>>, %arg9: memref<1x1xf32, #tpu.memory_space<vmem>>, %arg10: memref<1x128xf32, #tpu.memory_space<vmem>>) attributes {dimension_semantics = [#tpu.dimension_semantics<parallel>], iteration_bounds = array<i64: 1>, scalar_prefetch = 0 : i64, scratch_operands = 0 : i64, tpu.core_type = #tpu.core_type<tc>, window_params = [{transform_indices = @transform_0, window_bounds = array<i64: 1, 128>}, {pipeline_mode = #tpu.pipeline_mode<synchronous>, transform_indices = @transform_1, window_bounds = array<i64: 30, 1>}, {pipeline_mode = #tpu.pipeline_mode<synchronous>, transform_indices = @transform_2, window_bounds = array<i64: 30, 1>}, {pipeline_mode = #tpu.pipeline_mode<synchronous>, transform_indices = @transform_3, window_bounds = array<i64: 50, 30>}, {pipeline_mode = #tpu.pipeline_mode<synchronous>, transform_indices = @transform_4, window_bounds = array<i64: 50, 1>}, {pipeline_mode = #tpu.pipeline_mode<synchronous>, transform_indices = @transform_5, window_bounds = array<i64: 50, 50>}, {pipeline_mode = #tpu.pipeline_mode<synchronous>, transform_indices = @transform_6, window_bounds = array<i64: 50, 1>}, {pipeline_mode = #tpu.pipeline_mode<synchronous>, transform_indices = @transform_7, window_bounds = array<i64: 50, 1>}, {pipeline_mode = #tpu.pipeline_mode<synchronous>, transform_indices = @transform_8, window_bounds = array<i64: 1, 1>}, {transform_indices = @transform_9, window_bounds = array<i64: 1, 128>}]} {
    %c0 = arith.constant 0 : index
    %c0_0 = arith.constant 0 : index
    %0 = vector.load %arg1[%c0, %c0_0] : memref<1x128xf32, #tpu.memory_space<vmem>>, vector<1x128xf32>
    %c0_1 = arith.constant 0 : index
    %c0_2 = arith.constant 0 : index
    %1 = vector.load %arg2[%c0_1, %c0_2] : memref<30x1xf32, #tpu.memory_space<vmem>>, vector<30x1xf32>
    %2 = vector.broadcast %1 : vector<30x1xf32> to vector<30x128xf32>
    %3 = vector.broadcast %0 : vector<1x128xf32> to vector<30x128xf32>
    %4 = arith.mulf %2, %3 : vector<30x128xf32>
    %c0_3 = arith.constant 0 : index
    %c0_4 = arith.constant 0 : index
    %5 = vector.load %arg3[%c0_3, %c0_4] : memref<30x1xf32, #tpu.memory_space<vmem>>, vector<30x1xf32>
    %6 = vector.broadcast %5 : vector<30x1xf32> to vector<30x128xf32>
    %7 = arith.addf %4, %6 : vector<30x128xf32>
    %cst = arith.constant 5.000000e-01 : f32
    %8 = vector.broadcast %cst : f32 to vector<30x128xf32>
    %9 = arith.mulf %8, %7 : vector<30x128xf32>
    %10 = math.tanh %9 : vector<30x128xf32>
    %cst_5 = arith.constant 5.000000e-01 : f32
    %11 = vector.broadcast %cst_5 : f32 to vector<30x128xf32>
    %12 = arith.mulf %11, %10 : vector<30x128xf32>
    %cst_6 = arith.constant 5.000000e-01 : f32
    %13 = vector.broadcast %cst_6 : f32 to vector<30x128xf32>
    %14 = arith.addf %12, %13 : vector<30x128xf32>
    %c0_7 = arith.constant 0 : index
    %c0_8 = arith.constant 0 : index
    %15 = vector.load %arg4[%c0_7, %c0_8] : memref<50x30xf32, #tpu.memory_space<vmem>>, vector<50x30xf32>
    %cst_9 = arith.constant dense<0.000000e+00> : vector<50x128xf32>
    %16 = tpu.matmul %15, %14, %cst_9 {dimension_numbers = #tpu.dot_dimension_numbers<[1], [0], [0], [1], [0, 0, 1, 1], [], []>, precision = #tpu.contract_precision<fp32>} : vector<50x30xf32>, vector<30x128xf32>, vector<50x128xf32> -> vector<50x128xf32>
    %c0_10 = arith.constant 0 : index
    %c0_11 = arith.constant 0 : index
    %17 = vector.load %arg5[%c0_10, %c0_11] : memref<50x1xf32, #tpu.memory_space<vmem>>, vector<50x1xf32>
    %18 = vector.broadcast %17 : vector<50x1xf32> to vector<50x128xf32>
    %19 = arith.addf %16, %18 : vector<50x128xf32>
    %cst_12 = arith.constant 5.000000e-01 : f32
    %20 = vector.broadcast %cst_12 : f32 to vector<50x128xf32>
    %21 = arith.mulf %20, %19 : vector<50x128xf32>
    %22 = math.tanh %21 : vector<50x128xf32>
    %cst_13 = arith.constant 5.000000e-01 : f32
    %23 = vector.broadcast %cst_13 : f32 to vector<50x128xf32>
    %24 = arith.mulf %23, %22 : vector<50x128xf32>
    %cst_14 = arith.constant 5.000000e-01 : f32
    %25 = vector.broadcast %cst_14 : f32 to vector<50x128xf32>
    %26 = arith.addf %24, %25 : vector<50x128xf32>
    %c0_15 = arith.constant 0 : index
    %c0_16 = arith.constant 0 : index
    %27 = vector.load %arg6[%c0_15, %c0_16] : memref<50x50xf32, #tpu.memory_space<vmem>>, vector<50x50xf32>
    %cst_17 = arith.constant dense<0.000000e+00> : vector<50x128xf32>
    %28 = tpu.matmul %27, %26, %cst_17 {dimension_numbers = #tpu.dot_dimension_numbers<[1], [0], [0], [1], [0, 0, 1, 1], [], []>, precision = #tpu.contract_precision<fp32>} : vector<50x50xf32>, vector<50x128xf32>, vector<50x128xf32> -> vector<50x128xf32>
    %c0_18 = arith.constant 0 : index
    %c0_19 = arith.constant 0 : index
    %29 = vector.load %arg7[%c0_18, %c0_19] : memref<50x1xf32, #tpu.memory_space<vmem>>, vector<50x1xf32>
    %30 = vector.broadcast %29 : vector<50x1xf32> to vector<50x128xf32>
    %31 = arith.addf %28, %30 : vector<50x128xf32>
    %cst_20 = arith.constant 5.000000e-01 : f32
    %32 = vector.broadcast %cst_20 : f32 to vector<50x128xf32>
    %33 = arith.mulf %32, %31 : vector<50x128xf32>
    %34 = math.tanh %33 : vector<50x128xf32>
    %cst_21 = arith.constant 5.000000e-01 : f32
    %35 = vector.broadcast %cst_21 : f32 to vector<50x128xf32>
    %36 = arith.mulf %35, %34 : vector<50x128xf32>
    %cst_22 = arith.constant 5.000000e-01 : f32
    %37 = vector.broadcast %cst_22 : f32 to vector<50x128xf32>
    %38 = arith.addf %36, %37 : vector<50x128xf32>
    %c0_23 = arith.constant 0 : index
    %c0_24 = arith.constant 0 : index
    %39 = vector.load %arg8[%c0_23, %c0_24] : memref<50x1xf32, #tpu.memory_space<vmem>>, vector<50x1xf32>
    %40 = vector.broadcast %39 : vector<50x1xf32> to vector<50x128xf32>
    %41 = arith.mulf %40, %38 : vector<50x128xf32>
    %cst_25 = arith.constant dense<0.000000e+00> : vector<128xf32>
    %42 = vector.multi_reduction <add>, %41, %cst_25 [0] : vector<50x128xf32> to vector<128xf32>
    %43 = vector.shape_cast %42 : vector<128xf32> to vector<1x128xf32>
    %c0_26 = arith.constant 0 : index
    %c0_27 = arith.constant 0 : index
    %44 = vector.load %arg9[%c0_26, %c0_27] : memref<1x1xf32, #tpu.memory_space<vmem>>, vector<1x1xf32>
    %45 = vector.broadcast %44 : vector<1x1xf32> to vector<1x128xf32>
    %46 = arith.addf %43, %45 : vector<1x128xf32>
    %c0_28 = arith.constant 0 : index
    %c0_29 = arith.constant 0 : index
    %47 = vector.load %arg10[%c0_28, %c0_29] : memref<1x128xf32, #tpu.memory_space<vmem>>, vector<1x128xf32>
    tpu.vector_store %arg10[%c0_28, %c0_29], %46 {strides = array<i32>} : memref<1x128xf32, #tpu.memory_space<vmem>>, vector<1x128xf32>,
    return
  }
  func.func @transform_0(%arg0: i32) -> (i32, i32) {
    %c0_i32 = arith.constant 0 : i32
    %c0_i32_0 = arith.constant 0 : i32
    return %c0_i32, %arg0 : i32, i32
  }
  func.func @transform_1(%arg0: i32) -> (i32, i32) {
    %c0_i32 = arith.constant 0 : i32
    %c0_i32_0 = arith.constant 0 : i32
    %c0_i32_1 = arith.constant 0 : i32
    return %c0_i32, %c0_i32_0 : i32, i32
  }
  func.func @transform_2(%arg0: i32) -> (i32, i32) {
    %c0_i32 = arith.constant 0 : i32
    %c0_i32_0 = arith.constant 0 : i32
    %c0_i32_1 = arith.constant 0 : i32
    return %c0_i32, %c0_i32_0 : i32, i32
  }
  func.func @transform_3(%arg0: i32) -> (i32, i32) {
    %c0_i32 = arith.constant 0 : i32
    %c0_i32_0 = arith.constant 0 : i32
    %c0_i32_1 = arith.constant 0 : i32
    return %c0_i32, %c0_i32_0 : i32, i32
  }
  func.func @transform_4(%arg0: i32) -> (i32, i32) {
    %c0_i32 = arith.constant 0 : i32
    %c0_i32_0 = arith.constant 0 : i32
    %c0_i32_1 = arith.constant 0 : i32
    return %c0_i32, %c0_i32_0 : i32, i32
  }
  func.func @transform_5(%arg0: i32) -> (i32, i32) {
    %c0_i32 = arith.constant 0 : i32
    %c0_i32_0 = arith.constant 0 : i32
    %c0_i32_1 = arith.constant 0 : i32
    return %c0_i32, %c0_i32_0 : i32, i32
  }
  func.func @transform_6(%arg0: i32) -> (i32, i32) {
    %c0_i32 = arith.constant 0 : i32
    %c0_i32_0 = arith.constant 0 : i32
    %c0_i32_1 = arith.constant 0 : i32
    return %c0_i32, %c0_i32_0 : i32, i32
  }
  func.func @transform_7(%arg0: i32) -> (i32, i32) {
    %c0_i32 = arith.constant 0 : i32
    %c0_i32_0 = arith.constant 0 : i32
    %c0_i32_1 = arith.constant 0 : i32
    return %c0_i32, %c0_i32_0 : i32, i32
  }
  func.func @transform_8(%arg0: i32) -> (i32, i32) {
    %c0_i32 = arith.constant 0 : i32
    %c0_i32_0 = arith.constant 0 : i32
    %c0_i32_1 = arith.constant 0 : i32
    return %c0_i32, %c0_i32_0 : i32, i32
  }
  func.func @transform_9(%arg0: i32) -> (i32, i32) {
    %c0_i32 = arith.constant 0 : i32
    %c0_i32_0 = arith.constant 0 : i32
    return %c0_i32, %arg0 : i32, i32
  }
}

</mosaic_0001>

<llo_original>
// kernel: tpu_custom_call.1
$region0: #{tpu_custom_call.1}
  #allocation0 [shape = 'u32[]', space=smem, size = 0x4, offset = 0x4, fixed_abs, tag = 'smem constant byte address 0x4 - core index']
  #allocation1 [shape = 'u32[144,128]{1,0:T(1,128)}', space=vmem, size = 0x12000, scoped, tag = 'internal scratch']
  #allocation2 [shape = 'f32[1,1]{1,0:T(1,128)S(1)}', space=vmem, size = 0x200, scoped, tag = 'scoped memory for tpu_custom_call.1']
  %s0 = inlined_call_operand.vmem [shape: f32[1,128], index: 0, kind: input, shape index: {}]
  %s1 = inlined_call_operand.vmem [shape: f32[30,1], index: 1, kind: input, shape index: {}]
  %s2 = inlined_call_operand.vmem [shape: f32[30,1], index: 2, kind: input, shape index: {}]
  %s3 = inlined_call_operand.vmem [shape: f32[50,30], index: 3, kind: input, shape index: {}]
  %s4 = inlined_call_operand.vmem [shape: f32[50,1], index: 4, kind: input, shape index: {}]
  %s5 = inlined_call_operand.vmem [shape: f32[50,50], index: 5, kind: input, shape index: {}]
  %s6 = inlined_call_operand.vmem [shape: f32[50,1], index: 6, kind: input, shape index: {}]
  %s7 = inlined_call_operand.vmem [shape: f32[50,1], index: 7, kind: input, shape index: {}]
  %s8 = inlined_call_operand.<no memory space> [shape: f32[1,1], index: 8, kind: input, shape index: {}]
  %s9 = inlined_call_operand.hbm [shape: f32[1,128], index: 9, kind: output, shape index: {}]
  %s10 = sld [smem:[#allocation0]]
  $region46: #{tpu_custom_call.1} parent=0
    _
  %s12 = ssub.s32 1, %s10
  %s13 = scalar_select 0, %s12, %s10
  %v14 = vstv %s8
  %15 = vst [vmem:[#allocation2] sm:$0x1] %v14
  $region1: #{tpu_custom_call.1} parent=0
    #allocation3 [shape = 'u8[512]{0}', space=vmem, size = 0x400, scoped, tag = 'output window, operand 0, single buffered']
    #allocation4 [shape = 's32[1]{0}', space=sflag, size = 0x4, scoped, tag = 'scoped memory for tpu_custom_call.1']
    %16 = vsyncpa [#allocation4], 0
    // Predicated region
    $region2: #{tpu_custom_call.1} parent=1 // pred_check
      _
    $region3: #{tpu_custom_call.1} parent=1 // pred_check_branch
      %18 = sbr.rel (0) target = $region5
    $region4: #{tpu_custom_call.1} parent=1 // pred_region
      _
    $region5: #{tpu_custom_call.1} parent=1 // pred_fallthru
      _
    // Predicated region
    $region6: #{tpu_custom_call.1} parent=1 // pred_check
      _
    $region7: #{tpu_custom_call.1} parent=1 // pred_check_branch
      %20 = sbr.rel (0) target = $region9
    $region8: #{tpu_custom_call.1} parent=1 // pred_region
      _
    $region9: #{tpu_custom_call.1} parent=1 // pred_fallthru
      _
    // Predicated region
    $region10: #{tpu_custom_call.1} parent=1 // pred_check
      _
    $region11: #{tpu_custom_call.1} parent=1 // pred_check_branch
      %22 = sbr.rel (0) target = $region13
    $region12: #{tpu_custom_call.1} parent=1 // pred_region
      _
    $region13: #{tpu_custom_call.1} parent=1 // pred_fallthru
      _
    // Predicated region
    $region14: #{tpu_custom_call.1} parent=1 // pred_check
      _
    $region15: #{tpu_custom_call.1} parent=1 // pred_check_branch
      %24 = sbr.rel (0) target = $region17
    $region16: #{tpu_custom_call.1} parent=1 // pred_region
      _
    $region17: #{tpu_custom_call.1} parent=1 // pred_fallthru
      _
    // Predicated region
    $region18: #{tpu_custom_call.1} parent=1 // pred_check
      _
    $region19: #{tpu_custom_call.1} parent=1 // pred_check_branch
      %26 = sbr.rel (0) target = $region21
    $region20: #{tpu_custom_call.1} parent=1 // pred_region
      _
    $region21: #{tpu_custom_call.1} parent=1 // pred_fallthru
      _
    // Predicated region
    $region22: #{tpu_custom_call.1} parent=1 // pred_check
      _
    $region23: #{tpu_custom_call.1} parent=1 // pred_check_branch
      %28 = sbr.rel (0) target = $region25
    $region24: #{tpu_custom_call.1} parent=1 // pred_region
      _
    $region25: #{tpu_custom_call.1} parent=1 // pred_fallthru
      _
    // Predicated region
    $region26: #{tpu_custom_call.1} parent=1 // pred_check
      _
    $region27: #{tpu_custom_call.1} parent=1 // pred_check_branch
      %30 = sbr.rel (0) target = $region29
    $region28: #{tpu_custom_call.1} parent=1 // pred_region
      _
    $region29: #{tpu_custom_call.1} parent=1 // pred_fallthru
      _
    // Predicated region
    $region30: #{tpu_custom_call.1} parent=1 // pred_check
      _
    $region31: #{tpu_custom_call.1} parent=1 // pred_check_branch
      %32 = sbr.rel (0) target = $region33
    $region32: #{tpu_custom_call.1} parent=1 // pred_region
      _
    $region33: #{tpu_custom_call.1} parent=1 // pred_fallthru
      _
    // Predicated region
    $region34: #{tpu_custom_call.1} parent=1 // pred_check
      _
    $region35: #{tpu_custom_call.1} parent=1 // pred_check_branch
      %34 = sbr.rel (0) target = $region37
    $region36: #{tpu_custom_call.1} parent=1 // pred_region
      _
    $region37: #{tpu_custom_call.1} parent=1 // pred_fallthru
      _
    %v35 = vld [vmem:[%s0] sm:$0x1]
    %v36 = vld [vmem:[%s1] sm:$0xff]
    %v37 = vld [vmem:[%s1 + $0x8] sm:$0xff]
    %v38 = vld [vmem:[%s1 + $0x10] sm:$0xff]
    %v39 = vld [vmem:[%s1 + $0x18] sm:$0x3f]
    %41 = vset.pattern.permute.xlu0 0
    %42 = vperm.xlu0 %41, %v36
    %v43 = vpop.permute.xlu0 %42
    %46 = vset.pattern.permute.xlu0 0
    %47 = vperm.xlu0 %46, %v37
    %v48 = vpop.permute.xlu0 %47
    %51 = vset.pattern.permute.xlu0 0
    %52 = vperm.xlu0 %51, %v38
    %v53 = vpop.permute.xlu0 %52
    %56 = vset.pattern.permute.xlu0 0
    %57 = vperm.xlu0 %56, %v39
    %v58 = vpop.permute.xlu0 %57
    %v61 = vlaneseq
    %v62 = vshrl.u32 %v61, 7
    %v63 = vsub.s32 0, %v62
    %v64 = vrot.slane %v35, %v63
    %v66 = vmul.f32 %v43, %v64
    %v67 = vmul.f32 %v48, %v64
    %v68 = vmul.f32 %v53, %v64
    %v69 = vmul.f32 %v58, %v64
    %v70 = vld [vmem:[%s2] sm:$0xff]
    %v71 = vld [vmem:[%s2 + $0x8] sm:$0xff]
    %v72 = vld [vmem:[%s2 + $0x10] sm:$0xff]
    %v73 = vld [vmem:[%s2 + $0x18] sm:$0x3f]
    %75 = vset.pattern.permute.xlu0 0
    %76 = vperm.xlu0 %75, %v70
    %v77 = vpop.permute.xlu0 %76
    %80 = vset.pattern.permute.xlu0 0
    %81 = vperm.xlu0 %80, %v71
    %v82 = vpop.permute.xlu0 %81
    %85 = vset.pattern.permute.xlu0 0
    %86 = vperm.xlu0 %85, %v72
    %v87 = vpop.permute.xlu0 %86
    %90 = vset.pattern.permute.xlu0 0
    %91 = vperm.xlu0 %90, %v73
    %v92 = vpop.permute.xlu0 %91
    %v94 = vadd.f32 %v66, %v77
    %v95 = vadd.f32 %v67, %v82
    %v96 = vadd.f32 %v68, %v87
    %v97 = vadd.f32 %v69, %v92
    %v98 = vmul.f32 %v94, 0.5
    %v99 = vmul.f32 %v95, 0.5
    %v100 = vmul.f32 %v96, 0.5
    %v101 = vmul.f32 %v97, 0.5
    %v102 = vtanh.pop %v98
    %v103 = vtanh.pop %v99
    %v104 = vtanh.pop %v100
    %v105 = vtanh.pop %v101
    %v106 = vmul.f32 %v102, 0.5
    %v107 = vmul.f32 %v103, 0.5
    %v108 = vmul.f32 %v104, 0.5
    %v109 = vmul.f32 %v105, 0.5
    %v110 = vadd.f32 %v106, 0.5
    %v111 = vadd.f32 %v107, 0.5
    %v112 = vadd.f32 %v108, 0.5
    %v113 = vadd.f32 %v109, 0.5
    %v114 = vld [vmem:[%s3] sm:$0xff]
    %v115 = vld [vmem:[%s3 + $0x8] sm:$0xff]
    %v116 = vld [vmem:[%s3 + $0x10] sm:$0xff]
    %v117 = vld [vmem:[%s3 + $0x18] sm:$0xff]
    %v118 = vld [vmem:[%s3 + $0x20] sm:$0xff]
    %v119 = vld [vmem:[%s3 + $0x28] sm:$0xff]
    %v120 = vld [vmem:[%s3 + $0x30] sm:$0x3]
    %v121 = vld [vmem:[%s4] sm:$0xff]
    %v122 = vld [vmem:[%s4 + $0x8] sm:$0xff]
    %v123 = vld [vmem:[%s4 + $0x10] sm:$0xff]
    %v124 = vld [vmem:[%s4 + $0x18] sm:$0xff]
    %v125 = vld [vmem:[%s4 + $0x20] sm:$0xff]
    %v126 = vld [vmem:[%s4 + $0x28] sm:$0xff]
    %v127 = vld [vmem:[%s4 + $0x30] sm:$0x3]
    %129 = vset.pattern.permute.xlu0 0
    %130 = vperm.xlu0 %129, %v121
    %v131 = vpop.permute.xlu0 %130
    %134 = vset.pattern.permute.xlu0 0
    %135 = vperm.xlu0 %134, %v122
    %v136 = vpop.permute.xlu0 %135
    %139 = vset.pattern.permute.xlu0 0
    %140 = vperm.xlu0 %139, %v123
    %v141 = vpop.permute.xlu0 %140
    %144 = vset.pattern.permute.xlu0 0
    %145 = vperm.xlu0 %144, %v124
    %v146 = vpop.permute.xlu0 %145
    %149 = vset.pattern.permute.xlu0 0
    %150 = vperm.xlu0 %149, %v125
    %v151 = vpop.permute.xlu0 %150
    %154 = vset.pattern.permute.xlu0 0
    %155 = vperm.xlu0 %154, %v126
    %v156 = vpop.permute.xlu0 %155
    %159 = vset.pattern.permute.xlu0 0
    %160 = vperm.xlu0 %159, %v127
    %v161 = vpop.permute.xlu0 %160
    %vm163 = vcmask 244736
    %v165 = vsel %vm163, %v114, 0
    %v168 = vsel %vm163, %v115, 0
    %v171 = vsel %vm163, %v116, 0
    %v174 = vsel %vm163, %v117, 0
    %v177 = vsel %vm163, %v118, 0
    %v180 = vsel %vm163, %v119, 0
    %v183 = vsel %vm163, %v120, 0
    %vm185 = vcmask 1045504
    %v187 = vsel %vm185, %v113, 0
    %189 = vmatprep.subr.mxu0 0.0
    %v190 = vand.u32 %v110, 4294901760
    %191 = vmatpush1.msra.mxu0 %v190
    %192 = vmatprep.subr.mxu0 0.0
    %v193 = vand.u32 %v111, 4294901760
    %194 = vmatpush1.msra.mxu0 %v193
    %195 = vmatprep.subr.mxu0 0.0
    %v196 = vand.u32 %v112, 4294901760
    %197 = vmatpush1.msra.mxu0 %v196
    %198 = vmatprep.subr.mxu0 0.0
    %v199 = vand.u32 %v187, 4294901760
    %200 = vmatpush1.msra.mxu0 %v199
    %201 = vmatprep.subr.mxu0 0.0
    %202 = vmatpush1.msra.mxu0 0.0
    %203 = vmatprep.subr.mxu0 0.0
    %204 = vmatpush1.msra.mxu0 0.0
    %205 = vmatprep.subr.mxu0 0.0
    %206 = vmatpush1.msra.mxu0 0.0
    %207 = vmatprep.subr.mxu0 0.0
    %208 = vmatpush1.msra.mxu0 0.0
    %209 = vmatprep.subr.mxu0 0.0
    %210 = vmatpush1.msra.mxu0 0.0
    %211 = vmatprep.subr.mxu0 0.0
    %212 = vmatpush1.msra.mxu0 0.0
    %213 = vmatprep.subr.mxu0 0.0
    %214 = vmatpush1.msra.mxu0 0.0
    %215 = vmatprep.subr.mxu0 0.0
    %216 = vmatpush1.msra.mxu0 0.0
    %217 = vmatprep.subr.mxu0 0.0
    %218 = vmatpush1.msra.mxu0 0.0
    %219 = vmatprep.subr.mxu0 0.0
    %220 = vmatpush1.msra.mxu0 0.0
    %221 = vmatprep.subr.mxu0 0.0
    %222 = vmatpush1.msra.mxu0 0.0
    %223 = vmatprep.subr.mxu0 0.0
    %224 = vmatpush1.msra.mxu0 0.0
    %225 = vmatprep.subr.mxu0 0.0
    %226 = vmatpush1.msra.mxu0 0.0
    %227 = vmatprep.subr.mxu0 0.0
    %228 = vmatpush1.msra.mxu0 0.0
    %229 = vmatprep.subr.mxu0 0.0
    %230 = vmatpush1.msra.mxu0 0.0
    %231 = vmatprep.subr.mxu0 0.0
    %232 = vmatpush1.msra.mxu0 0.0
    %233 = vmatprep.subr.mxu0 0.0
    %234 = vmatpush1.msra.mxu0 0.0
    %235 = vmatprep.subr.mxu0 0.0
    %236 = vmatpush1.msra.mxu0 0.0
    %237 = vmatprep.subr.mxu0 0.0
    %238 = vmatpush1.msra.mxu0 0.0
    %239 = vmatprep.subr.mxu0 0.0
    %240 = vmatpush1.msra.mxu0 0.0
    %241 = vmatprep.subr.mxu0 0.0
    %242 = vmatpush1.msra.mxu0 0.0
    %243 = vmatprep.subr.mxu0 0.0
    %244 = vmatpush1.msra.mxu0 0.0
    %245 = vmatprep.subr.mxu0 0.0
    %246 = vmatpush1.msra.mxu0 0.0
    %247 = vmatprep.subr.mxu0 0.0
    %248 = vmatpush1.msra.mxu0 0.0
    %249 = vmatprep.subr.mxu0 0.0
    %250 = vmatpush1.msra.mxu0 0.0
    %251 = vmatprep.subr.mxu0 0.0
    %252 = vmatpush1.msra.mxu0 0.0
    %253 = vmatprep.subr.mxu0 0.0
    %254 = vmatpush1.msra.mxu0 0.0
    %255 = vmatprep.subr.mxu0 0.0
    %256 = vmatpush1.msra.mxu0 0.0
    %257 = vmatprep.mubr.f32.mxu0 0.0
    %v258 = vand.u32 %v165, 4294901760
    %v259 = vsub.f32 %v165, %v258
    %v260 = vand.u32 %v259, 4294901760
    %v261 = vsub.f32 %v259, %v260
    %v262 = vand.u32 %v261, 4294901760
    %263 = vmatmul.mubr.f32.gmra.mrb[0].mxu0 %v262
    %v264 = vpop.f32.mrb[0].mxu0
    %v265 = vadd.f32 %v131, %v264
    %v266 = vpop.f32.mrb[0].mxu0
    %267 = vmatprep.mubr.f32.mxu0 0.0
    %v268 = vand.u32 %v168, 4294901760
    %v269 = vsub.f32 %v168, %v268
    %v270 = vand.u32 %v269, 4294901760
    %v271 = vsub.f32 %v269, %v270
    %v272 = vand.u32 %v271, 4294901760
    %273 = vmatmul.mubr.f32.gmra.mrb[0].mxu0 %v272
    %v274 = vpop.f32.mrb[0].mxu0
    %v275 = vadd.f32 %v136, %v274
    %v276 = vpop.f32.mrb[0].mxu0
    %277 = vmatprep.mubr.f32.mxu0 0.0
    %v278 = vand.u32 %v171, 4294901760
    %v279 = vsub.f32 %v171, %v278
    %v280 = vand.u32 %v279, 4294901760
    %v281 = vsub.f32 %v279, %v280
    %v282 = vand.u32 %v281, 4294901760
    %283 = vmatmul.mubr.f32.gmra.mrb[0].mxu0 %v282
    %v284 = vpop.f32.mrb[0].mxu0
    %v285 = vadd.f32 %v141, %v284
    %v286 = vpop.f32.mrb[0].mxu0
    %287 = vmatprep.mubr.f32.mxu0 0.0
    %v288 = vand.u32 %v174, 4294901760
    %v289 = vsub.f32 %v174, %v288
    %v290 = vand.u32 %v289, 4294901760
    %v291 = vsub.f32 %v289, %v290
    %v292 = vand.u32 %v291, 4294901760
    %293 = vmatmul.mubr.f32.gmra.mrb[0].mxu0 %v292
    %v294 = vpop.f32.mrb[0].mxu0
    %v295 = vadd.f32 %v146, %v294
    %v296 = vpop.f32.mrb[0].mxu0
    %297 = vmatprep.mubr.f32.mxu0 0.0
    %v298 = vand.u32 %v177, 4294901760
    %v299 = vsub.f32 %v177, %v298
    %v300 = vand.u32 %v299, 4294901760
    %v301 = vsub.f32 %v299, %v300
    %v302 = vand.u32 %v301, 4294901760
    %303 = vmatmul.mubr.f32.gmra.mrb[0].mxu0 %v302
    %v304 = vpop.f32.mrb[0].mxu0
    %v305 = vadd.f32 %v151, %v304
    %v306 = vpop.f32.mrb[0].mxu0
    %307 = vmatprep.mubr.f32.mxu0 0.0
    %v308 = vand.u32 %v180, 4294901760
    %v309 = vsub.f32 %v180, %v308
    %v310 = vand.u32 %v309, 4294901760
    %v311 = vsub.f32 %v309, %v310
    %v312 = vand.u32 %v311, 4294901760
    %313 = vmatmul.mubr.f32.gmra.mrb[0].mxu0 %v312
    %v314 = vpop.f32.mrb[0].mxu0
    %v315 = vadd.f32 %v156, %v314
    %v316 = vpop.f32.mrb[0].mxu0
    %317 = vmatprep.mubr.f32.mxu0 0.0
    %v318 = vand.u32 %v183, 4294901760
    %v319 = vsub.f32 %v183, %v318
    %v320 = vand.u32 %v319, 4294901760
    %v321 = vsub.f32 %v319, %v320
    %v322 = vand.u32 %v321, 4294901760
    %323 = vmatmul.mubr.f32.gmra.mrb[0].mxu0 %v322
    %v324 = vpop.f32.mrb[0].mxu0
    %v325 = vadd.f32 %v161, %v324
    %v326 = vpop.f32.mrb[0].mxu0
    %327 = vdwg.mxu0
    %328 = vmatprep.subr.mxu0 0.0
    %v329 = vand.u32 %v110, 4294901760
    %v330 = vsub.f32 %v110, %v329
    %v331 = vand.u32 %v330, 4294901760
    %v332 = vsub.f32 %v330, %v331
    %v333 = vand.u32 %v332, 4294901760
    %334 = vmatpush1.msra.mxu0 %v333
    %335 = vmatprep.subr.mxu0 0.0
    %v336 = vand.u32 %v111, 4294901760
    %v337 = vsub.f32 %v111, %v336
    %v338 = vand.u32 %v337, 4294901760
    %v339 = vsub.f32 %v337, %v338
    %v340 = vand.u32 %v339, 4294901760
    %341 = vmatpush1.msra.mxu0 %v340
    %342 = vmatprep.subr.mxu0 0.0
    %v343 = vand.u32 %v112, 4294901760
    %v344 = vsub.f32 %v112, %v343
    %v345 = vand.u32 %v344, 4294901760
    %v346 = vsub.f32 %v344, %v345
    %v347 = vand.u32 %v346, 4294901760
    %348 = vmatpush1.msra.mxu0 %v347
    %349 = vmatprep.subr.mxu0 0.0
    %v350 = vand.u32 %v187, 4294901760
    %v351 = vsub.f32 %v187, %v350
    %v352 = vand.u32 %v351, 4294901760
    %v353 = vsub.f32 %v351, %v352
    %v354 = vand.u32 %v353, 4294901760
    %355 = vmatpush1.msra.mxu0 %v354
    %356 = vmatprep.subr.mxu0 0.0
    %357 = vmatpush1.msra.mxu0 0.0
    %358 = vmatprep.subr.mxu0 0.0
    %359 = vmatpush1.msra.mxu0 0.0
    %360 = vmatprep.subr.mxu0 0.0
    %361 = vmatpush1.msra.mxu0 0.0
    %362 = vmatprep.subr.mxu0 0.0
    %363 = vmatpush1.msra.mxu0 0.0
    %364 = vmatprep.subr.mxu0 0.0
    %365 = vmatpush1.msra.mxu0 0.0
    %366 = vmatprep.subr.mxu0 0.0
    %367 = vmatpush1.msra.mxu0 0.0
    %368 = vmatprep.subr.mxu0 0.0
    %369 = vmatpush1.msra.mxu0 0.0
    %370 = vmatprep.subr.mxu0 0.0
    %371 = vmatpush1.msra.mxu0 0.0
    %372 = vmatprep.subr.mxu0 0.0
    %373 = vmatpush1.msra.mxu0 0.0
    %374 = vmatprep.subr.mxu0 0.0
    %375 = vmatpush1.msra.mxu0 0.0
    %376 = vmatprep.subr.mxu0 0.0
    %377 = vmatpush1.msra.mxu0 0.0
    %378 = vmatprep.subr.mxu0 0.0
    %379 = vmatpush1.msra.mxu0 0.0
    %380 = vmatprep.subr.mxu0 0.0
    %381 = vmatpush1.msra.mxu0 0.0
    %382 = vmatprep.subr.mxu0 0.0
    %383 = vmatpush1.msra.mxu0 0.0
    %384 = vmatprep.subr.mxu0 0.0
    %385 = vmatpush1.msra.mxu0 0.0
    %386 = vmatprep.subr.mxu0 0.0
    %387 = vmatpush1.msra.mxu0 0.0
    %388 = vmatprep.subr.mxu0 0.0
    %389 = vmatpush1.msra.mxu0 0.0
    %390 = vmatprep.subr.mxu0 0.0
    %391 = vmatpush1.msra.mxu0 0.0
    %392 = vmatprep.subr.mxu0 0.0
    %393 = vmatpush1.msra.mxu0 0.0
    %394 = vmatprep.subr.mxu0 0.0
    %395 = vmatpush1.msra.mxu0 0.0
    %396 = vmatprep.subr.mxu0 0.0
    %397 = vmatpush1.msra.mxu0 0.0
    %398 = vmatprep.subr.mxu0 0.0
    %399 = vmatpush1.msra.mxu0 0.0
    %400 = vmatprep.subr.mxu0 0.0
    %401 = vmatpush1.msra.mxu0 0.0
    %402 = vmatprep.subr.mxu0 0.0
    %403 = vmatpush1.msra.mxu0 0.0
    %404 = vmatprep.subr.mxu0 0.0
    %405 = vmatpush1.msra.mxu0 0.0
    %406 = vmatprep.subr.mxu0 0.0
    %407 = vmatpush1.msra.mxu0 0.0
    %408 = vmatprep.subr.mxu0 0.0
    %409 = vmatpush1.msra.mxu0 0.0
    %410 = vmatprep.subr.mxu0 0.0
    %411 = vmatpush1.msra.mxu0 0.0
    %412 = vmatprep.mubr.f32.mxu0 0.0
    %v413 = vand.u32 %v165, 4294901760
    %414 = vmatmul.mubr.f32.gmra.mrb[0].mxu0 %v413
    %v415 = vpop.f32.mrb[0].mxu0
    %v416 = vadd.f32 %v265, %v415
    %v417 = vpop.f32.mrb[0].mxu0
    %418 = vmatprep.mubr.f32.mxu0 0.0
    %v419 = vand.u32 %v168, 4294901760
    %420 = vmatmul.mubr.f32.gmra.mrb[0].mxu0 %v419
    %v421 = vpop.f32.mrb[0].mxu0
    %v422 = vadd.f32 %v275, %v421
    %v423 = vpop.f32.mrb[0].mxu0
    %424 = vmatprep.mubr.f32.mxu0 0.0
    %v425 = vand.u32 %v171, 4294901760
    %426 = vmatmul.mubr.f32.gmra.mrb[0].mxu0 %v425
    %v427 = vpop.f32.mrb[0].mxu0
    %v428 = vadd.f32 %v285, %v427
    %v429 = vpop.f32.mrb[0].mxu0
    %430 = vmatprep.mubr.f32.mxu0 0.0
    %v431 = vand.u32 %v174, 4294901760
    %432 = vmatmul.mubr.f32.gmra.mrb[0].mxu0 %v431
    %v433 = vpop.f32.mrb[0].mxu0
    %v434 = vadd.f32 %v295, %v433
    %v435 = vpop.f32.mrb[0].mxu0
    %436 = vmatprep.mubr.f32.mxu0 0.0
    %v437 = vand.u32 %v177, 4294901760
    %438 = vmatmul.mubr.f32.gmra.mrb[0].mxu0 %v437
    %v439 = vpop.f32.mrb[0].mxu0
    %v440 = vadd.f32 %v305, %v439
    %v441 = vpop.f32.mrb[0].mxu0
    %442 = vmatprep.mubr.f32.mxu0 0.0
    %v443 = vand.u32 %v180, 4294901760
    %444 = vmatmul.mubr.f32.gmra.mrb[0].mxu0 %v443
    %v445 = vpop.f32.mrb[0].mxu0
    %v446 = vadd.f32 %v315, %v445
    %v447 = vpop.f32.mrb[0].mxu0
    %448 = vmatprep.mubr.f32.mxu0 0.0
    %v449 = vand.u32 %v183, 4294901760
    %450 = vmatmul.mubr.f32.gmra.mrb[0].mxu0 %v449
    %v451 = vpop.f32.mrb[0].mxu0
    %v452 = vadd.f32 %v325, %v451
    %v453 = vpop.f32.mrb[0].mxu0
    %454 = vdwg.mxu0
    %455 = vmatprep.subr.mxu0 0.0
    %v456 = vand.u32 %v110, 4294901760
    %v457 = vsub.f32 %v110, %v456
    %458 = vmatpush1.msra.mxu0 %v457
    %459 = vmatprep.subr.mxu0 0.0
    %v460 = vand.u32 %v111, 4294901760
    %v461 = vsub.f32 %v111, %v460
    %462 = vmatpush1.msra.mxu0 %v461
    %463 = vmatprep.subr.mxu0 0.0
    %v464 = vand.u32 %v112, 4294901760
    %v465 = vsub.f32 %v112, %v464
    %466 = vmatpush1.msra.mxu0 %v465
    %467 = vmatprep.subr.mxu0 0.0
    %v468 = vand.u32 %v187, 4294901760
    %v469 = vsub.f32 %v187, %v468
    %470 = vmatpush1.msra.mxu0 %v469
    %471 = vmatprep.subr.mxu0 0.0
    %472 = vmatpush1.msra.mxu0 0.0
    %473 = vmatprep.subr.mxu0 0.0
    %474 = vmatpush1.msra.mxu0 0.0
    %475 = vmatprep.subr.mxu0 0.0
    %476 = vmatpush1.msra.mxu0 0.0
    %477 = vmatprep.subr.mxu0 0.0
    %478 = vmatpush1.msra.mxu0 0.0
    %479 = vmatprep.subr.mxu0 0.0
    %480 = vmatpush1.msra.mxu0 0.0
    %481 = vmatprep.subr.mxu0 0.0
    %482 = vmatpush1.msra.mxu0 0.0
    %483 = vmatprep.subr.mxu0 0.0
    %484 = vmatpush1.msra.mxu0 0.0
    %485 = vmatprep.subr.mxu0 0.0
    %486 = vmatpush1.msra.mxu0 0.0
    %487 = vmatprep.subr.mxu0 0.0
    %488 = vmatpush1.msra.mxu0 0.0
    %489 = vmatprep.subr.mxu0 0.0
    %490 = vmatpush1.msra.mxu0 0.0
    %491 = vmatprep.subr.mxu0 0.0
    %492 = vmatpush1.msra.mxu0 0.0
    %493 = vmatprep.subr.mxu0 0.0
    %494 = vmatpush1.msra.mxu0 0.0
    %495 = vmatprep.subr.mxu0 0.0
    %496 = vmatpush1.msra.mxu0 0.0
    %497 = vmatprep.subr.mxu0 0.0
    %498 = vmatpush1.msra.mxu0 0.0
    %499 = vmatprep.subr.mxu0 0.0
    %500 = vmatpush1.msra.mxu0 0.0
    %501 = vmatprep.subr.mxu0 0.0
    %502 = vmatpush1.msra.mxu0 0.0
    %503 = vmatprep.subr.mxu0 0.0
    %504 = vmatpush1.msra.mxu0 0.0
    %505 = vmatprep.subr.mxu0 0.0
    %506 = vmatpush1.msra.mxu0 0.0
    %507 = vmatprep.subr.mxu0 0.0
    %508 = vmatpush1.msra.mxu0 0.0
    %509 = vmatprep.subr.mxu0 0.0
    %510 = vmatpush1.msra.mxu0 0.0
    %511 = vmatprep.subr.mxu0 0.0
    %512 = vmatpush1.msra.mxu0 0.0
    %513 = vmatprep.subr.mxu0 0.0
    %514 = vmatpush1.msra.mxu0 0.0
    %515 = vmatprep.subr.mxu0 0.0
    %516 = vmatpush1.msra.mxu0 0.0
    %517 = vmatprep.subr.mxu0 0.0
    %518 = vmatpush1.msra.mxu0 0.0
    %519 = vmatprep.subr.mxu0 0.0
    %520 = vmatpush1.msra.mxu0 0.0
    %521 = vmatprep.subr.mxu0 0.0
    %522 = vmatpush1.msra.mxu0 0.0
    %523 = vmatprep.subr.mxu0 0.0
    %524 = vmatpush1.msra.mxu0 0.0
    %525 = vmatprep.subr.mxu0 0.0
    %526 = vmatpush1.msra.mxu0 0.0
    %527 = vmatprep.mubr.f32.mxu0 0.0
    %v528 = vand.u32 %v165, 4294901760
    %v529 = vsub.f32 %v165, %v528
    %530 = vmatmul.mubr.f32.gmra.mrb[0].mxu0 %v529
    %v531 = vpop.f32.mrb[0].mxu0
    %v532 = vadd.f32 %v416, %v531
    %v533 = vpop.f32.mrb[0].mxu0
    %534 = vmatprep.mubr.f32.mxu0 0.0
    %v535 = vand.u32 %v168, 4294901760
    %v536 = vsub.f32 %v168, %v535
    %537 = vmatmul.mubr.f32.gmra.mrb[0].mxu0 %v536
    %v538 = vpop.f32.mrb[0].mxu0
    %v539 = vadd.f32 %v422, %v538
    %v540 = vpop.f32.mrb[0].mxu0
    %541 = vmatprep.mubr.f32.mxu0 0.0
    %v542 = vand.u32 %v171, 4294901760
    %v543 = vsub.f32 %v171, %v542
    %544 = vmatmul.mubr.f32.gmra.mrb[0].mxu0 %v543
    %v545 = vpop.f32.mrb[0].mxu0
    %v546 = vadd.f32 %v428, %v545
    %v547 = vpop.f32.mrb[0].mxu0
    %548 = vmatprep.mubr.f32.mxu0 0.0
    %v549 = vand.u32 %v174, 4294901760
    %v550 = vsub.f32 %v174, %v549
    %551 = vmatmul.mubr.f32.gmra.mrb[0].mxu0 %v550
    %v552 = vpop.f32.mrb[0].mxu0
    %v553 = vadd.f32 %v434, %v552
    %v554 = vpop.f32.mrb[0].mxu0
    %555 = vmatprep.mubr.f32.mxu0 0.0
    %v556 = vand.u32 %v177, 4294901760
    %v557 = vsub.f32 %v177, %v556
    %558 = vmatmul.mubr.f32.gmra.mrb[0].mxu0 %v557
    %v559 = vpop.f32.mrb[0].mxu0
    %v560 = vadd.f32 %v440, %v559
    %v561 = vpop.f32.mrb[0].mxu0
    %562 = vmatprep.mubr.f32.mxu0 0.0
    %v563 = vand.u32 %v180, 4294901760
    %v564 = vsub.f32 %v180, %v563
    %565 = vmatmul.mubr.f32.gmra.mrb[0].mxu0 %v564
    %v566 = vpop.f32.mrb[0].mxu0
    %v567 = vadd.f32 %v446, %v566
    %v568 = vpop.f32.mrb[0].mxu0
    %569 = vmatprep.mubr.f32.mxu0 0.0
    %v570 = vand.u32 %v183, 4294901760
    %v571 = vsub.f32 %v183, %v570
    %572 = vmatmul.mubr.f32.gmra.mrb[0].mxu0 %v571
    %v573 = vpop.f32.mrb[0].mxu0
    %v574 = vadd.f32 %v452, %v573
    %v575 = vpop.f32.mrb[0].mxu0
    %576 = vdwg.mxu0
    %577 = vmatprep.subr.mxu0 0.0
    %v578 = vand.u32 %v110, 4294901760
    %579 = vmatpush1.msra.mxu0 %v578
    %580 = vmatprep.subr.mxu0 0.0
    %v581 = vand.u32 %v111, 4294901760
    %582 = vmatpush1.msra.mxu0 %v581
    %583 = vmatprep.subr.mxu0 0.0
    %v584 = vand.u32 %v112, 4294901760
    %585 = vmatpush1.msra.mxu0 %v584
    %586 = vmatprep.subr.mxu0 0.0
    %v587 = vand.u32 %v187, 4294901760
    %588 = vmatpush1.msra.mxu0 %v587
    %589 = vmatprep.subr.mxu0 0.0
    %590 = vmatpush1.msra.mxu0 0.0
    %591 = vmatprep.subr.mxu0 0.0
    %592 = vmatpush1.msra.mxu0 0.0
    %593 = vmatprep.subr.mxu0 0.0
    %594 = vmatpush1.msra.mxu0 0.0
    %595 = vmatprep.subr.mxu0 0.0
    %596 = vmatpush1.msra.mxu0 0.0
    %597 = vmatprep.subr.mxu0 0.0
    %598 = vmatpush1.msra.mxu0 0.0
    %599 = vmatprep.subr.mxu0 0.0
    %600 = vmatpush1.msra.mxu0 0.0
    %601 = vmatprep.subr.mxu0 0.0
    %602 = vmatpush1.msra.mxu0 0.0
    %603 = vmatprep.subr.mxu0 0.0
    %604 = vmatpush1.msra.mxu0 0.0
    %605 = vmatprep.subr.mxu0 0.0
    %606 = vmatpush1.msra.mxu0 0.0
    %607 = vmatprep.subr.mxu0 0.0
    %608 = vmatpush1.msra.mxu0 0.0
    %609 = vmatprep.subr.mxu0 0.0
    %610 = vmatpush1.msra.mxu0 0.0
    %611 = vmatprep.subr.mxu0 0.0
    %612 = vmatpush1.msra.mxu0 0.0
    %613 = vmatprep.subr.mxu0 0.0
    %614 = vmatpush1.msra.mxu0 0.0
    %615 = vmatprep.subr.mxu0 0.0
    %616 = vmatpush1.msra.mxu0 0.0
    %617 = vmatprep.subr.mxu0 0.0
    %618 = vmatpush1.msra.mxu0 0.0
    %619 = vmatprep.subr.mxu0 0.0
    %620 = vmatpush1.msra.mxu0 0.0
    %621 = vmatprep.subr.mxu0 0.0
    %622 = vmatpush1.msra.mxu0 0.0
    %623 = vmatprep.subr.mxu0 0.0
    %624 = vmatpush1.msra.mxu0 0.0
    %625 = vmatprep.subr.mxu0 0.0
    %626 = vmatpush1.msra.mxu0 0.0
    %627 = vmatprep.subr.mxu0 0.0
    %628 = vmatpush1.msra.mxu0 0.0
    %629 = vmatprep.subr.mxu0 0.0
    %630 = vmatpush1.msra.mxu0 0.0
    %631 = vmatprep.subr.mxu0 0.0
    %632 = vmatpush1.msra.mxu0 0.0
    %633 = vmatprep.subr.mxu0 0.0
    %634 = vmatpush1.msra.mxu0 0.0
    %635 = vmatprep.subr.mxu0 0.0
    %636 = vmatpush1.msra.mxu0 0.0
    %637 = vmatprep.subr.mxu0 0.0
    %638 = vmatpush1.msra.mxu0 0.0
    %639 = vmatprep.subr.mxu0 0.0
    %640 = vmatpush1.msra.mxu0 0.0
    %641 = vmatprep.subr.mxu0 0.0
    %642 = vmatpush1.msra.mxu0 0.0
    %643 = vmatprep.subr.mxu0 0.0
    %644 = vmatpush1.msra.mxu0 0.0
    %645 = vmatprep.mubr.f32.mxu0 0.0
    %v646 = vand.u32 %v165, 4294901760
    %v647 = vsub.f32 %v165, %v646
    %v648 = vand.u32 %v647, 4294901760
    %649 = vmatmul.mubr.f32.gmra.mrb[0].mxu0 %v648
    %v650 = vpop.f32.mrb[0].mxu0
    %v651 = vadd.f32 %v532, %v650
    %v652 = vpop.f32.mrb[0].mxu0
    %653 = vmatprep.mubr.f32.mxu0 0.0
    %v654 = vand.u32 %v168, 4294901760
    %v655 = vsub.f32 %v168, %v654
    %v656 = vand.u32 %v655, 4294901760
    %657 = vmatmul.mubr.f32.gmra.mrb[0].mxu0 %v656
    %v658 = vpop.f32.mrb[0].mxu0
    %v659 = vadd.f32 %v539, %v658
    %v660 = vpop.f32.mrb[0].mxu0
    %661 = vmatprep.mubr.f32.mxu0 0.0
    %v662 = vand.u32 %v171, 4294901760
    %v663 = vsub.f32 %v171, %v662
    %v664 = vand.u32 %v663, 4294901760
    %665 = vmatmul.mubr.f32.gmra.mrb[0].mxu0 %v664
    %v666 = vpop.f32.mrb[0].mxu0
    %v667 = vadd.f32 %v546, %v666
    %v668 = vpop.f32.mrb[0].mxu0
    %669 = vmatprep.mubr.f32.mxu0 0.0
    %v670 = vand.u32 %v174, 4294901760
    %v671 = vsub.f32 %v174, %v670
    %v672 = vand.u32 %v671, 4294901760
    %673 = vmatmul.mubr.f32.gmra.mrb[0].mxu0 %v672
    %v674 = vpop.f32.mrb[0].mxu0
    %v675 = vadd.f32 %v553, %v674
    %v676 = vpop.f32.mrb[0].mxu0
    %677 = vmatprep.mubr.f32.mxu0 0.0
    %v678 = vand.u32 %v177, 4294901760
    %v679 = vsub.f32 %v177, %v678
    %v680 = vand.u32 %v679, 4294901760
    %681 = vmatmul.mubr.f32.gmra.mrb[0].mxu0 %v680
    %v682 = vpop.f32.mrb[0].mxu0
    %v683 = vadd.f32 %v560, %v682
    %v684 = vpop.f32.mrb[0].mxu0
    %685 = vmatprep.mubr.f32.mxu0 0.0
    %v686 = vand.u32 %v180, 4294901760
    %v687 = vsub.f32 %v180, %v686
    %v688 = vand.u32 %v687, 4294901760
    %689 = vmatmul.mubr.f32.gmra.mrb[0].mxu0 %v688
    %v690 = vpop.f32.mrb[0].mxu0
    %v691 = vadd.f32 %v567, %v690
    %v692 = vpop.f32.mrb[0].mxu0
    %693 = vmatprep.mubr.f32.mxu0 0.0
    %v694 = vand.u32 %v183, 4294901760
    %v695 = vsub.f32 %v183, %v694
    %v696 = vand.u32 %v695, 4294901760
    %697 = vmatmul.mubr.f32.gmra.mrb[0].mxu0 %v696
    %v698 = vpop.f32.mrb[0].mxu0
    %v699 = vadd.f32 %v574, %v698
    %v700 = vpop.f32.mrb[0].mxu0
    %701 = vdwg.mxu0
    %702 = vmatprep.subr.mxu0 0.0
    %v703 = vand.u32 %v110, 4294901760
    %v704 = vsub.f32 %v110, %v703
    %v705 = vand.u32 %v704, 4294901760
    %706 = vmatpush1.msra.mxu0 %v705
    %707 = vmatprep.subr.mxu0 0.0
    %v708 = vand.u32 %v111, 4294901760
    %v709 = vsub.f32 %v111, %v708
    %v710 = vand.u32 %v709, 4294901760
    %711 = vmatpush1.msra.mxu0 %v710
    %712 = vmatprep.subr.mxu0 0.0
    %v713 = vand.u32 %v112, 4294901760
    %v714 = vsub.f32 %v112, %v713
    %v715 = vand.u32 %v714, 4294901760
    %716 = vmatpush1.msra.mxu0 %v715
    %717 = vmatprep.subr.mxu0 0.0
    %v718 = vand.u32 %v187, 4294901760
    %v719 = vsub.f32 %v187, %v718
    %v720 = vand.u32 %v719, 4294901760
    %721 = vmatpush1.msra.mxu0 %v720
    %722 = vmatprep.subr.mxu0 0.0
    %723 = vmatpush1.msra.mxu0 0.0
    %724 = vmatprep.subr.mxu0 0.0
    %725 = vmatpush1.msra.mxu0 0.0
    %726 = vmatprep.subr.mxu0 0.0
    %727 = vmatpush1.msra.mxu0 0.0
    %728 = vmatprep.subr.mxu0 0.0
    %729 = vmatpush1.msra.mxu0 0.0
    %730 = vmatprep.subr.mxu0 0.0
    %731 = vmatpush1.msra.mxu0 0.0
    %732 = vmatprep.subr.mxu0 0.0
    %733 = vmatpush1.msra.mxu0 0.0
    %734 = vmatprep.subr.mxu0 0.0
    %735 = vmatpush1.msra.mxu0 0.0
    %736 = vmatprep.subr.mxu0 0.0
    %737 = vmatpush1.msra.mxu0 0.0
    %738 = vmatprep.subr.mxu0 0.0
    %739 = vmatpush1.msra.mxu0 0.0
    %740 = vmatprep.subr.mxu0 0.0
    %741 = vmatpush1.msra.mxu0 0.0
    %742 = vmatprep.subr.mxu0 0.0
    %743 = vmatpush1.msra.mxu0 0.0
    %744 = vmatprep.subr.mxu0 0.0
    %745 = vmatpush1.msra.mxu0 0.0
    %746 = vmatprep.subr.mxu0 0.0
    %747 = vmatpush1.msra.mxu0 0.0
    %748 = vmatprep.subr.mxu0 0.0
    %749 = vmatpush1.msra.mxu0 0.0
    %750 = vmatprep.subr.mxu0 0.0
    %751 = vmatpush1.msra.mxu0 0.0
    %752 = vmatprep.subr.mxu0 0.0
    %753 = vmatpush1.msra.mxu0 0.0
    %754 = vmatprep.subr.mxu0 0.0
    %755 = vmatpush1.msra.mxu0 0.0
    %756 = vmatprep.subr.mxu0 0.0
    %757 = vmatpush1.msra.mxu0 0.0
    %758 = vmatprep.subr.mxu0 0.0
    %759 = vmatpush1.msra.mxu0 0.0
    %760 = vmatprep.subr.mxu0 0.0
    %761 = vmatpush1.msra.mxu0 0.0
    %762 = vmatprep.subr.mxu0 0.0
    %763 = vmatpush1.msra.mxu0 0.0
    %764 = vmatprep.subr.mxu0 0.0
    %765 = vmatpush1.msra.mxu0 0.0
    %766 = vmatprep.subr.mxu0 0.0
    %767 = vmatpush1.msra.mxu0 0.0
    %768 = vmatprep.subr.mxu0 0.0
    %769 = vmatpush1.msra.mxu0 0.0
    %770 = vmatprep.subr.mxu0 0.0
    %771 = vmatpush1.msra.mxu0 0.0
    %772 = vmatprep.subr.mxu0 0.0
    %773 = vmatpush1.msra.mxu0 0.0
    %774 = vmatprep.subr.mxu0 0.0
    %775 = vmatpush1.msra.mxu0 0.0
    %776 = vmatprep.subr.mxu0 0.0
    %777 = vmatpush1.msra.mxu0 0.0
    %778 = vmatprep.mubr.f32.mxu0 0.0
    %v779 = vand.u32 %v165, 4294901760
    %780 = vmatmul.mubr.f32.gmra.mrb[0].mxu0 %v779
    %v781 = vpop.f32.mrb[0].mxu0
    %v782 = vadd.f32 %v651, %v781
    %v783 = vpop.f32.mrb[0].mxu0
    %784 = vmatprep.mubr.f32.mxu0 0.0
    %v785 = vand.u32 %v168, 4294901760
    %786 = vmatmul.mubr.f32.gmra.mrb[0].mxu0 %v785
    %v787 = vpop.f32.mrb[0].mxu0
    %v788 = vadd.f32 %v659, %v787
    %v789 = vpop.f32.mrb[0].mxu0
    %790 = vmatprep.mubr.f32.mxu0 0.0
    %v791 = vand.u32 %v171, 4294901760
    %792 = vmatmul.mubr.f32.gmra.mrb[0].mxu0 %v791
    %v793 = vpop.f32.mrb[0].mxu0
    %v794 = vadd.f32 %v667, %v793
    %v795 = vpop.f32.mrb[0].mxu0
    %796 = vmatprep.mubr.f32.mxu0 0.0
    %v797 = vand.u32 %v174, 4294901760
    %798 = vmatmul.mubr.f32.gmra.mrb[0].mxu0 %v797
    %v799 = vpop.f32.mrb[0].mxu0
    %v800 = vadd.f32 %v675, %v799
    %v801 = vpop.f32.mrb[0].mxu0
    %802 = vmatprep.mubr.f32.mxu0 0.0
    %v803 = vand.u32 %v177, 4294901760
    %804 = vmatmul.mubr.f32.gmra.mrb[0].mxu0 %v803
    %v805 = vpop.f32.mrb[0].mxu0
    %v806 = vadd.f32 %v683, %v805
    %v807 = vpop.f32.mrb[0].mxu0
    %808 = vmatprep.mubr.f32.mxu0 0.0
    %v809 = vand.u32 %v180, 4294901760
    %810 = vmatmul.mubr.f32.gmra.mrb[0].mxu0 %v809
    %v811 = vpop.f32.mrb[0].mxu0
    %v812 = vadd.f32 %v691, %v811
    %v813 = vpop.f32.mrb[0].mxu0
    %814 = vmatprep.mubr.f32.mxu0 0.0
    %v815 = vand.u32 %v183, 4294901760
    %816 = vmatmul.mubr.f32.gmra.mrb[0].mxu0 %v815
    %v817 = vpop.f32.mrb[0].mxu0
    %v818 = vadd.f32 %v699, %v817
    %v819 = vpop.f32.mrb[0].mxu0
    %820 = vdwg.mxu0
    %821 = vmatprep.subr.mxu0 0.0
    %v822 = vand.u32 %v110, 4294901760
    %823 = vmatpush1.msra.mxu0 %v822
    %824 = vmatprep.subr.mxu0 0.0
    %v825 = vand.u32 %v111, 4294901760
    %826 = vmatpush1.msra.mxu0 %v825
    %827 = vmatprep.subr.mxu0 0.0
    %v828 = vand.u32 %v112, 4294901760
    %829 = vmatpush1.msra.mxu0 %v828
    %830 = vmatprep.subr.mxu0 0.0
    %v831 = vand.u32 %v187, 4294901760
    %832 = vmatpush1.msra.mxu0 %v831
    %833 = vmatprep.subr.mxu0 0.0
    %834 = vmatpush1.msra.mxu0 0.0
    %835 = vmatprep.subr.mxu0 0.0
    %836 = vmatpush1.msra.mxu0 0.0
    %837 = vmatprep.subr.mxu0 0.0
    %838 = vmatpush1.msra.mxu0 0.0
    %839 = vmatprep.subr.mxu0 0.0
    %840 = vmatpush1.msra.mxu0 0.0
    %841 = vmatprep.subr.mxu0 0.0
    %842 = vmatpush1.msra.mxu0 0.0
    %843 = vmatprep.subr.mxu0 0.0
    %844 = vmatpush1.msra.mxu0 0.0
    %845 = vmatprep.subr.mxu0 0.0
    %846 = vmatpush1.msra.mxu0 0.0
    %847 = vmatprep.subr.mxu0 0.0
    %848 = vmatpush1.msra.mxu0 0.0
    %849 = vmatprep.subr.mxu0 0.0
    %850 = vmatpush1.msra.mxu0 0.0
    %851 = vmatprep.subr.mxu0 0.0
    %852 = vmatpush1.msra.mxu0 0.0
    %853 = vmatprep.subr.mxu0 0.0
    %854 = vmatpush1.msra.mxu0 0.0
    %855 = vmatprep.subr.mxu0 0.0
    %856 = vmatpush1.msra.mxu0 0.0
    %857 = vmatprep.subr.mxu0 0.0
    %858 = vmatpush1.msra.mxu0 0.0
    %859 = vmatprep.subr.mxu0 0.0
    %860 = vmatpush1.msra.mxu0 0.0
    %861 = vmatprep.subr.mxu0 0.0
    %862 = vmatpush1.msra.mxu0 0.0
    %863 = vmatprep.subr.mxu0 0.0
    %864 = vmatpush1.msra.mxu0 0.0
    %865 = vmatprep.subr.mxu0 0.0
    %866 = vmatpush1.msra.mxu0 0.0
    %867 = vmatprep.subr.mxu0 0.0
    %868 = vmatpush1.msra.mxu0 0.0
    %869 = vmatprep.subr.mxu0 0.0
    %870 = vmatpush1.msra.mxu0 0.0
    %871 = vmatprep.subr.mxu0 0.0
    %872 = vmatpush1.msra.mxu0 0.0
    %873 = vmatprep.subr.mxu0 0.0
    %874 = vmatpush1.msra.mxu0 0.0
    %875 = vmatprep.subr.mxu0 0.0
    %876 = vmatpush1.msra.mxu0 0.0
    %877 = vmatprep.subr.mxu0 0.0
    %878 = vmatpush1.msra.mxu0 0.0
    %879 = vmatprep.subr.mxu0 0.0
    %880 = vmatpush1.msra.mxu0 0.0
    %881 = vmatprep.subr.mxu0 0.0
    %882 = vmatpush1.msra.mxu0 0.0
    %883 = vmatprep.subr.mxu0 0.0
    %884 = vmatpush1.msra.mxu0 0.0
    %885 = vmatprep.subr.mxu0 0.0
    %886 = vmatpush1.msra.mxu0 0.0
    %887 = vmatprep.subr.mxu0 0.0
    %888 = vmatpush1.msra.mxu0 0.0
    %889 = vmatprep.mubr.f32.mxu0 0.0
    %v890 = vand.u32 %v165, 4294901760
    %891 = vmatmul.mubr.f32.gmra.mrb[0].mxu0 %v890
    %v892 = vpop.f32.mrb[0].mxu0
    %v893 = vadd.f32 %v782, %v892
    %v894 = vpop.f32.mrb[0].mxu0
    %895 = vmatprep.mubr.f32.mxu0 0.0
    %v896 = vand.u32 %v168, 4294901760
    %897 = vmatmul.mubr.f32.gmra.mrb[0].mxu0 %v896
    %v898 = vpop.f32.mrb[0].mxu0
    %v899 = vadd.f32 %v788, %v898
    %v900 = vpop.f32.mrb[0].mxu0
    %901 = vmatprep.mubr.f32.mxu0 0.0
    %v902 = vand.u32 %v171, 4294901760
    %903 = vmatmul.mubr.f32.gmra.mrb[0].mxu0 %v902
    %v904 = vpop.f32.mrb[0].mxu0
    %v905 = vadd.f32 %v794, %v904
    %v906 = vpop.f32.mrb[0].mxu0
    %907 = vmatprep.mubr.f32.mxu0 0.0
    %v908 = vand.u32 %v174, 4294901760
    %909 = vmatmul.mubr.f32.gmra.mrb[0].mxu0 %v908
    %v910 = vpop.f32.mrb[0].mxu0
    %v911 = vadd.f32 %v800, %v910
    %v912 = vpop.f32.mrb[0].mxu0
    %913 = vmatprep.mubr.f32.mxu0 0.0
    %v914 = vand.u32 %v177, 4294901760
    %915 = vmatmul.mubr.f32.gmra.mrb[0].mxu0 %v914
    %v916 = vpop.f32.mrb[0].mxu0
    %v917 = vadd.f32 %v806, %v916
    %v918 = vpop.f32.mrb[0].mxu0
    %919 = vmatprep.mubr.f32.mxu0 0.0
    %v920 = vand.u32 %v180, 4294901760
    %921 = vmatmul.mubr.f32.gmra.mrb[0].mxu0 %v920
    %v922 = vpop.f32.mrb[0].mxu0
    %v923 = vadd.f32 %v812, %v922
    %v924 = vpop.f32.mrb[0].mxu0
    %925 = vmatprep.mubr.f32.mxu0 0.0
    %v926 = vand.u32 %v183, 4294901760
    %927 = vmatmul.mubr.f32.gmra.mrb[0].mxu0 %v926
    %v928 = vpop.f32.mrb[0].mxu0
    %v929 = vadd.f32 %v818, %v928
    %v930 = vpop.f32.mrb[0].mxu0
    %931 = vdwg.mxu0
    %v932 = vmul.f32 %v893, 0.5
    %v933 = vmul.f32 %v899, 0.5
    %v934 = vmul.f32 %v905, 0.5
    %v935 = vmul.f32 %v911, 0.5
    %v936 = vmul.f32 %v917, 0.5
    %v937 = vmul.f32 %v923, 0.5
    %v938 = vmul.f32 %v929, 0.5
    %v939 = vtanh.pop %v932
    %v940 = vtanh.pop %v933
    %v941 = vtanh.pop %v934
    %v942 = vtanh.pop %v935
    %v943 = vtanh.pop %v936
    %v944 = vtanh.pop %v937
    %v945 = vtanh.pop %v938
    %v946 = vmul.f32 %v939, 0.5
    %v947 = vmul.f32 %v940, 0.5
    %v948 = vmul.f32 %v941, 0.5
    %v949 = vmul.f32 %v942, 0.5
    %v950 = vmul.f32 %v943, 0.5
    %v951 = vmul.f32 %v944, 0.5
    %v952 = vmul.f32 %v945, 0.5
    %v953 = vadd.f32 %v946, 0.5
    %v954 = vadd.f32 %v947, 0.5
    %v955 = vadd.f32 %v948, 0.5
    %v956 = vadd.f32 %v949, 0.5
    %v957 = vadd.f32 %v950, 0.5
    %v958 = vadd.f32 %v951, 0.5
    %v959 = vadd.f32 %v952, 0.5
    %v960 = vld [vmem:[%s5] sm:$0xff]
    %v961 = vld [vmem:[%s5 + $0x8] sm:$0xff]
    %v962 = vld [vmem:[%s5 + $0x10] sm:$0xff]
    %v963 = vld [vmem:[%s5 + $0x18] sm:$0xff]
    %v964 = vld [vmem:[%s5 + $0x20] sm:$0xff]
    %v965 = vld [vmem:[%s5 + $0x28] sm:$0xff]
    %v966 = vld [vmem:[%s5 + $0x30] sm:$0x3]
    %v967 = vld [vmem:[%s6] sm:$0xff]
    %v968 = vld [vmem:[%s6 + $0x8] sm:$0xff]
    %v969 = vld [vmem:[%s6 + $0x10] sm:$0xff]
    %v970 = vld [vmem:[%s6 + $0x18] sm:$0xff]
    %v971 = vld [vmem:[%s6 + $0x20] sm:$0xff]
    %v972 = vld [vmem:[%s6 + $0x28] sm:$0xff]
    %v973 = vld [vmem:[%s6 + $0x30] sm:$0x3]
    %975 = vset.pattern.permute.xlu0 0
    %976 = vperm.xlu0 %975, %v967
    %v977 = vpop.permute.xlu0 %976
    %980 = vset.pattern.permute.xlu0 0
    %981 = vperm.xlu0 %980, %v968
    %v982 = vpop.permute.xlu0 %981
    %985 = vset.pattern.permute.xlu0 0
    %986 = vperm.xlu0 %985, %v969
    %v987 = vpop.permute.xlu0 %986
    %990 = vset.pattern.permute.xlu0 0
    %991 = vperm.xlu0 %990, %v970
    %v992 = vpop.permute.xlu0 %991
    %995 = vset.pattern.permute.xlu0 0
    %996 = vperm.xlu0 %995, %v971
    %v997 = vpop.permute.xlu0 %996
    %1000 = vset.pattern.permute.xlu0 0
    %1001 = vperm.xlu0 %1000, %v972
    %v1002 = vpop.permute.xlu0 %1001
    %1005 = vset.pattern.permute.xlu0 0
    %1006 = vperm.xlu0 %1005, %v973
    %v1007 = vpop.permute.xlu0 %1006
    %vm1009 = vcmask 408576
    %v1011 = vsel %vm1009, %v960, 0
    %v1014 = vsel %vm1009, %v961, 0
    %v1017 = vsel %vm1009, %v962, 0
    %v1020 = vsel %vm1009, %v963, 0
    %v1023 = vsel %vm1009, %v964, 0
    %v1026 = vsel %vm1009, %v965, 0
    %v1029 = vsel %vm1009, %v966, 0
    %vm1031 = vcmask 1041408
    %v1033 = vsel %vm1031, %v959, 0
    %1035 = vmatprep.subr.mxu0 0.0
    %v1036 = vand.u32 %v953, 4294901760
    %1037 = vmatpush1.msra.mxu0 %v1036
    %1038 = vmatprep.subr.mxu0 0.0
    %v1039 = vand.u32 %v954, 4294901760
    %1040 = vmatpush1.msra.mxu0 %v1039
    %1041 = vmatprep.subr.mxu0 0.0
    %v1042 = vand.u32 %v955, 4294901760
    %1043 = vmatpush1.msra.mxu0 %v1042
    %1044 = vmatprep.subr.mxu0 0.0
    %v1045 = vand.u32 %v956, 4294901760
    %1046 = vmatpush1.msra.mxu0 %v1045
    %1047 = vmatprep.subr.mxu0 0.0
    %v1048 = vand.u32 %v957, 4294901760
    %1049 = vmatpush1.msra.mxu0 %v1048
    %1050 = vmatprep.subr.mxu0 0.0
    %v1051 = vand.u32 %v958, 4294901760
    %1052 = vmatpush1.msra.mxu0 %v1051
    %1053 = vmatprep.subr.mxu0 0.0
    %v1054 = vand.u32 %v1033, 4294901760
    %1055 = vmatpush1.msra.mxu0 %v1054
    %1056 = vmatprep.subr.mxu0 0.0
    %1057 = vmatpush1.msra.mxu0 0.0
    %1058 = vmatprep.subr.mxu0 0.0
    %1059 = vmatpush1.msra.mxu0 0.0
    %1060 = vmatprep.subr.mxu0 0.0
    %1061 = vmatpush1.msra.mxu0 0.0
    %1062 = vmatprep.subr.mxu0 0.0
    %1063 = vmatpush1.msra.mxu0 0.0
    %1064 = vmatprep.subr.mxu0 0.0
    %1065 = vmatpush1.msra.mxu0 0.0
    %1066 = vmatprep.subr.mxu0 0.0
    %1067 = vmatpush1.msra.mxu0 0.0
    %1068 = vmatprep.subr.mxu0 0.0
    %1069 = vmatpush1.msra.mxu0 0.0
    %1070 = vmatprep.subr.mxu0 0.0
    %1071 = vmatpush1.msra.mxu0 0.0
    %1072 = vmatprep.subr.mxu0 0.0
    %1073 = vmatpush1.msra.mxu0 0.0
    %1074 = vmatprep.subr.mxu0 0.0
    %1075 = vmatpush1.msra.mxu0 0.0
    %1076 = vmatprep.subr.mxu0 0.0
    %1077 = vmatpush1.msra.mxu0 0.0
    %1078 = vmatprep.subr.mxu0 0.0
    %1079 = vmatpush1.msra.mxu0 0.0
    %1080 = vmatprep.subr.mxu0 0.0
    %1081 = vmatpush1.msra.mxu0 0.0
    %1082 = vmatprep.subr.mxu0 0.0
    %1083 = vmatpush1.msra.mxu0 0.0
    %1084 = vmatprep.subr.mxu0 0.0
    %1085 = vmatpush1.msra.mxu0 0.0
    %1086 = vmatprep.subr.mxu0 0.0
    %1087 = vmatpush1.msra.mxu0 0.0
    %1088 = vmatprep.subr.mxu0 0.0
    %1089 = vmatpush1.msra.mxu0 0.0
    %1090 = vmatprep.subr.mxu0 0.0
    %1091 = vmatpush1.msra.mxu0 0.0
    %1092 = vmatprep.subr.mxu0 0.0
    %1093 = vmatpush1.msra.mxu0 0.0
    %1094 = vmatprep.subr.mxu0 0.0
    %1095 = vmatpush1.msra.mxu0 0.0
    %1096 = vmatprep.subr.mxu0 0.0
    %1097 = vmatpush1.msra.mxu0 0.0
    %1098 = vmatprep.subr.mxu0 0.0
    %1099 = vmatpush1.msra.mxu0 0.0
    %1100 = vmatprep.subr.mxu0 0.0
    %1101 = vmatpush1.msra.mxu0 0.0
    %1102 = vmatprep.subr.mxu0 0.0
    %1103 = vmatpush1.msra.mxu0 0.0
    %1104 = vmatprep.subr.mxu0 0.0
    %1105 = vmatpush1.msra.mxu0 0.0
    %1106 = vmatprep.mubr.f32.mxu0 0.0
    %v1107 = vand.u32 %v1011, 4294901760
    %v1108 = vsub.f32 %v1011, %v1107
    %v1109 = vand.u32 %v1108, 4294901760
    %v1110 = vsub.f32 %v1108, %v1109
    %v1111 = vand.u32 %v1110, 4294901760
    %1112 = vmatmul.mubr.f32.gmra.mrb[0].mxu0 %v1111
    %v1113 = vpop.f32.mrb[0].mxu0
    %v1114 = vadd.f32 %v977, %v1113
    %v1115 = vpop.f32.mrb[0].mxu0
    %1116 = vmatprep.mubr.f32.mxu0 0.0
    %v1117 = vand.u32 %v1014, 4294901760
    %v1118 = vsub.f32 %v1014, %v1117
    %v1119 = vand.u32 %v1118, 4294901760
    %v1120 = vsub.f32 %v1118, %v1119
    %v1121 = vand.u32 %v1120, 4294901760
    %1122 = vmatmul.mubr.f32.gmra.mrb[0].mxu0 %v1121
    %v1123 = vpop.f32.mrb[0].mxu0
    %v1124 = vadd.f32 %v982, %v1123
    %v1125 = vpop.f32.mrb[0].mxu0
    %1126 = vmatprep.mubr.f32.mxu0 0.0
    %v1127 = vand.u32 %v1017, 4294901760
    %v1128 = vsub.f32 %v1017, %v1127
    %v1129 = vand.u32 %v1128, 4294901760
    %v1130 = vsub.f32 %v1128, %v1129
    %v1131 = vand.u32 %v1130, 4294901760
    %1132 = vmatmul.mubr.f32.gmra.mrb[0].mxu0 %v1131
    %v1133 = vpop.f32.mrb[0].mxu0
    %v1134 = vadd.f32 %v987, %v1133
    %v1135 = vpop.f32.mrb[0].mxu0
    %1136 = vmatprep.mubr.f32.mxu0 0.0
    %v1137 = vand.u32 %v1020, 4294901760
    %v1138 = vsub.f32 %v1020, %v1137
    %v1139 = vand.u32 %v1138, 4294901760
    %v1140 = vsub.f32 %v1138, %v1139
    %v1141 = vand.u32 %v1140, 4294901760
    %1142 = vmatmul.mubr.f32.gmra.mrb[0].mxu0 %v1141
    %v1143 = vpop.f32.mrb[0].mxu0
    %v1144 = vadd.f32 %v992, %v1143
    %v1145 = vpop.f32.mrb[0].mxu0
    %1146 = vmatprep.mubr.f32.mxu0 0.0
    %v1147 = vand.u32 %v1023, 4294901760
    %v1148 = vsub.f32 %v1023, %v1147
    %v1149 = vand.u32 %v1148, 4294901760
    %v1150 = vsub.f32 %v1148, %v1149
    %v1151 = vand.u32 %v1150, 4294901760
    %1152 = vmatmul.mubr.f32.gmra.mrb[0].mxu0 %v1151
    %v1153 = vpop.f32.mrb[0].mxu0
    %v1154 = vadd.f32 %v997, %v1153
    %v1155 = vpop.f32.mrb[0].mxu0
    %1156 = vmatprep.mubr.f32.mxu0 0.0
    %v1157 = vand.u32 %v1026, 4294901760
    %v1158 = vsub.f32 %v1026, %v1157
    %v1159 = vand.u32 %v1158, 4294901760
    %v1160 = vsub.f32 %v1158, %v1159
    %v1161 = vand.u32 %v1160, 4294901760
    %1162 = vmatmul.mubr.f32.gmra.mrb[0].mxu0 %v1161
    %v1163 = vpop.f32.mrb[0].mxu0
    %v1164 = vadd.f32 %v1002, %v1163
    %v1165 = vpop.f32.mrb[0].mxu0
    %1166 = vmatprep.mubr.f32.mxu0 0.0
    %v1167 = vand.u32 %v1029, 4294901760
    %v1168 = vsub.f32 %v1029, %v1167
    %v1169 = vand.u32 %v1168, 4294901760
    %v1170 = vsub.f32 %v1168, %v1169
    %v1171 = vand.u32 %v1170, 4294901760
    %1172 = vmatmul.mubr.f32.gmra.mrb[0].mxu0 %v1171
    %v1173 = vpop.f32.mrb[0].mxu0
    %v1174 = vadd.f32 %v1007, %v1173
    %v1175 = vpop.f32.mrb[0].mxu0
    %1176 = vdwg.mxu0
    %1177 = vmatprep.subr.mxu0 0.0
    %v1178 = vand.u32 %v953, 4294901760
    %v1179 = vsub.f32 %v953, %v1178
    %v1180 = vand.u32 %v1179, 4294901760
    %v1181 = vsub.f32 %v1179, %v1180
    %v1182 = vand.u32 %v1181, 4294901760
    %1183 = vmatpush1.msra.mxu0 %v1182
    %1184 = vmatprep.subr.mxu0 0.0
    %v1185 = vand.u32 %v954, 4294901760
    %v1186 = vsub.f32 %v954, %v1185
    %v1187 = vand.u32 %v1186, 4294901760
    %v1188 = vsub.f32 %v1186, %v1187
    %v1189 = vand.u32 %v1188, 4294901760
    %1190 = vmatpush1.msra.mxu0 %v1189
    %1191 = vmatprep.subr.mxu0 0.0
    %v1192 = vand.u32 %v955, 4294901760
    %v1193 = vsub.f32 %v955, %v1192
    %v1194 = vand.u32 %v1193, 4294901760
    %v1195 = vsub.f32 %v1193, %v1194
    %v1196 = vand.u32 %v1195, 4294901760
    %1197 = vmatpush1.msra.mxu0 %v1196
    %1198 = vmatprep.subr.mxu0 0.0
    %v1199 = vand.u32 %v956, 4294901760
    %v1200 = vsub.f32 %v956, %v1199
    %v1201 = vand.u32 %v1200, 4294901760
    %v1202 = vsub.f32 %v1200, %v1201
    %v1203 = vand.u32 %v1202, 4294901760
    %1204 = vmatpush1.msra.mxu0 %v1203
    %1205 = vmatprep.subr.mxu0 0.0
    %v1206 = vand.u32 %v957, 4294901760
    %v1207 = vsub.f32 %v957, %v1206
    %v1208 = vand.u32 %v1207, 4294901760
    %v1209 = vsub.f32 %v1207, %v1208
    %v1210 = vand.u32 %v1209, 4294901760
    %1211 = vmatpush1.msra.mxu0 %v1210
    %1212 = vmatprep.subr.mxu0 0.0
    %v1213 = vand.u32 %v958, 4294901760
    %v1214 = vsub.f32 %v958, %v1213
    %v1215 = vand.u32 %v1214, 4294901760
    %v1216 = vsub.f32 %v1214, %v1215
    %v1217 = vand.u32 %v1216, 4294901760
    %1218 = vmatpush1.msra.mxu0 %v1217
    %1219 = vmatprep.subr.mxu0 0.0
    %v1220 = vand.u32 %v1033, 4294901760
    %v1221 = vsub.f32 %v1033, %v1220
    %v1222 = vand.u32 %v1221, 4294901760
    %v1223 = vsub.f32 %v1221, %v1222
    %v1224 = vand.u32 %v1223, 4294901760
    %1225 = vmatpush1.msra.mxu0 %v1224
    %1226 = vmatprep.subr.mxu0 0.0
    %1227 = vmatpush1.msra.mxu0 0.0
    %1228 = vmatprep.subr.mxu0 0.0
    %1229 = vmatpush1.msra.mxu0 0.0
    %1230 = vmatprep.subr.mxu0 0.0
    %1231 = vmatpush1.msra.mxu0 0.0
    %1232 = vmatprep.subr.mxu0 0.0
    %1233 = vmatpush1.msra.mxu0 0.0
    %1234 = vmatprep.subr.mxu0 0.0
    %1235 = vmatpush1.msra.mxu0 0.0
    %1236 = vmatprep.subr.mxu0 0.0
    %1237 = vmatpush1.msra.mxu0 0.0
    %1238 = vmatprep.subr.mxu0 0.0
    %1239 = vmatpush1.msra.mxu0 0.0
    %1240 = vmatprep.subr.mxu0 0.0
    %1241 = vmatpush1.msra.mxu0 0.0
    %1242 = vmatprep.subr.mxu0 0.0
    %1243 = vmatpush1.msra.mxu0 0.0
    %1244 = vmatprep.subr.mxu0 0.0
    %1245 = vmatpush1.msra.mxu0 0.0
    %1246 = vmatprep.subr.mxu0 0.0
    %1247 = vmatpush1.msra.mxu0 0.0
    %1248 = vmatprep.subr.mxu0 0.0
    %1249 = vmatpush1.msra.mxu0 0.0
    %1250 = vmatprep.subr.mxu0 0.0
    %1251 = vmatpush1.msra.mxu0 0.0
    %1252 = vmatprep.subr.mxu0 0.0
    %1253 = vmatpush1.msra.mxu0 0.0
    %1254 = vmatprep.subr.mxu0 0.0
    %1255 = vmatpush1.msra.mxu0 0.0
    %1256 = vmatprep.subr.mxu0 0.0
    %1257 = vmatpush1.msra.mxu0 0.0
    %1258 = vmatprep.subr.mxu0 0.0
    %1259 = vmatpush1.msra.mxu0 0.0
    %1260 = vmatprep.subr.mxu0 0.0
    %1261 = vmatpush1.msra.mxu0 0.0
    %1262 = vmatprep.subr.mxu0 0.0
    %1263 = vmatpush1.msra.mxu0 0.0
    %1264 = vmatprep.subr.mxu0 0.0
    %1265 = vmatpush1.msra.mxu0 0.0
    %1266 = vmatprep.subr.mxu0 0.0
    %1267 = vmatpush1.msra.mxu0 0.0
    %1268 = vmatprep.subr.mxu0 0.0
    %1269 = vmatpush1.msra.mxu0 0.0
    %1270 = vmatprep.subr.mxu0 0.0
    %1271 = vmatpush1.msra.mxu0 0.0
    %1272 = vmatprep.subr.mxu0 0.0
    %1273 = vmatpush1.msra.mxu0 0.0
    %1274 = vmatprep.subr.mxu0 0.0
    %1275 = vmatpush1.msra.mxu0 0.0
    %1276 = vmatprep.mubr.f32.mxu0 0.0
    %v1277 = vand.u32 %v1011, 4294901760
    %1278 = vmatmul.mubr.f32.gmra.mrb[0].mxu0 %v1277
    %v1279 = vpop.f32.mrb[0].mxu0
    %v1280 = vadd.f32 %v1114, %v1279
    %v1281 = vpop.f32.mrb[0].mxu0
    %1282 = vmatprep.mubr.f32.mxu0 0.0
    %v1283 = vand.u32 %v1014, 4294901760
    %1284 = vmatmul.mubr.f32.gmra.mrb[0].mxu0 %v1283
    %v1285 = vpop.f32.mrb[0].mxu0
    %v1286 = vadd.f32 %v1124, %v1285
    %v1287 = vpop.f32.mrb[0].mxu0
    %1288 = vmatprep.mubr.f32.mxu0 0.0
    %v1289 = vand.u32 %v1017, 4294901760
    %1290 = vmatmul.mubr.f32.gmra.mrb[0].mxu0 %v1289
    %v1291 = vpop.f32.mrb[0].mxu0
    %v1292 = vadd.f32 %v1134, %v1291
    %v1293 = vpop.f32.mrb[0].mxu0
    %1294 = vmatprep.mubr.f32.mxu0 0.0
    %v1295 = vand.u32 %v1020, 4294901760
    %1296 = vmatmul.mubr.f32.gmra.mrb[0].mxu0 %v1295
    %v1297 = vpop.f32.mrb[0].mxu0
    %v1298 = vadd.f32 %v1144, %v1297
    %v1299 = vpop.f32.mrb[0].mxu0
    %1300 = vmatprep.mubr.f32.mxu0 0.0
    %v1301 = vand.u32 %v1023, 4294901760
    %1302 = vmatmul.mubr.f32.gmra.mrb[0].mxu0 %v1301
    %v1303 = vpop.f32.mrb[0].mxu0
    %v1304 = vadd.f32 %v1154, %v1303
    %v1305 = vpop.f32.mrb[0].mxu0
    %1306 = vmatprep.mubr.f32.mxu0 0.0
    %v1307 = vand.u32 %v1026, 4294901760
    %1308 = vmatmul.mubr.f32.gmra.mrb[0].mxu0 %v1307
    %v1309 = vpop.f32.mrb[0].mxu0
    %v1310 = vadd.f32 %v1164, %v1309
    %v1311 = vpop.f32.mrb[0].mxu0
    %1312 = vmatprep.mubr.f32.mxu0 0.0
    %v1313 = vand.u32 %v1029, 4294901760
    %1314 = vmatmul.mubr.f32.gmra.mrb[0].mxu0 %v1313
    %v1315 = vpop.f32.mrb[0].mxu0
    %v1316 = vadd.f32 %v1174, %v1315
    %v1317 = vpop.f32.mrb[0].mxu0
    %1318 = vdwg.mxu0
    %1319 = vmatprep.subr.mxu0 0.0
    %v1320 = vand.u32 %v953, 4294901760
    %v1321 = vsub.f32 %v953, %v1320
    %1322 = vmatpush1.msra.mxu0 %v1321
    %1323 = vmatprep.subr.mxu0 0.0
    %v1324 = vand.u32 %v954, 4294901760
    %v1325 = vsub.f32 %v954, %v1324
    %1326 = vmatpush1.msra.mxu0 %v1325
    %1327 = vmatprep.subr.mxu0 0.0
    %v1328 = vand.u32 %v955, 4294901760
    %v1329 = vsub.f32 %v955, %v1328
    %1330 = vmatpush1.msra.mxu0 %v1329
    %1331 = vmatprep.subr.mxu0 0.0
    %v1332 = vand.u32 %v956, 4294901760
    %v1333 = vsub.f32 %v956, %v1332
    %1334 = vmatpush1.msra.mxu0 %v1333
    %1335 = vmatprep.subr.mxu0 0.0
    %v1336 = vand.u32 %v957, 4294901760
    %v1337 = vsub.f32 %v957, %v1336
    %1338 = vmatpush1.msra.mxu0 %v1337
    %1339 = vmatprep.subr.mxu0 0.0
    %v1340 = vand.u32 %v958, 4294901760
    %v1341 = vsub.f32 %v958, %v1340
    %1342 = vmatpush1.msra.mxu0 %v1341
    %1343 = vmatprep.subr.mxu0 0.0
    %v1344 = vand.u32 %v1033, 4294901760
    %v1345 = vsub.f32 %v1033, %v1344
    %1346 = vmatpush1.msra.mxu0 %v1345
    %1347 = vmatprep.subr.mxu0 0.0
    %1348 = vmatpush1.msra.mxu0 0.0
    %1349 = vmatprep.subr.mxu0 0.0
    %1350 = vmatpush1.msra.mxu0 0.0
    %1351 = vmatprep.subr.mxu0 0.0
    %1352 = vmatpush1.msra.mxu0 0.0
    %1353 = vmatprep.subr.mxu0 0.0
    %1354 = vmatpush1.msra.mxu0 0.0
    %1355 = vmatprep.subr.mxu0 0.0
    %1356 = vmatpush1.msra.mxu0 0.0
    %1357 = vmatprep.subr.mxu0 0.0
    %1358 = vmatpush1.msra.mxu0 0.0
    %1359 = vmatprep.subr.mxu0 0.0
    %1360 = vmatpush1.msra.mxu0 0.0
    %1361 = vmatprep.subr.mxu0 0.0
    %1362 = vmatpush1.msra.mxu0 0.0
    %1363 = vmatprep.subr.mxu0 0.0
    %1364 = vmatpush1.msra.mxu0 0.0
    %1365 = vmatprep.subr.mxu0 0.0
    %1366 = vmatpush1.msra.mxu0 0.0
    %1367 = vmatprep.subr.mxu0 0.0
    %1368 = vmatpush1.msra.mxu0 0.0
    %1369 = vmatprep.subr.mxu0 0.0
    %1370 = vmatpush1.msra.mxu0 0.0
    %1371 = vmatprep.subr.mxu0 0.0
    %1372 = vmatpush1.msra.mxu0 0.0
    %1373 = vmatprep.subr.mxu0 0.0
    %1374 = vmatpush1.msra.mxu0 0.0
    %1375 = vmatprep.subr.mxu0 0.0
    %1376 = vmatpush1.msra.mxu0 0.0
    %1377 = vmatprep.subr.mxu0 0.0
    %1378 = vmatpush1.msra.mxu0 0.0
    %1379 = vmatprep.subr.mxu0 0.0
    %1380 = vmatpush1.msra.mxu0 0.0
    %1381 = vmatprep.subr.mxu0 0.0
    %1382 = vmatpush1.msra.mxu0 0.0
    %1383 = vmatprep.subr.mxu0 0.0
    %1384 = vmatpush1.msra.mxu0 0.0
    %1385 = vmatprep.subr.mxu0 0.0
    %1386 = vmatpush1.msra.mxu0 0.0
    %1387 = vmatprep.subr.mxu0 0.0
    %1388 = vmatpush1.msra.mxu0 0.0
    %1389 = vmatprep.subr.mxu0 0.0
    %1390 = vmatpush1.msra.mxu0 0.0
    %1391 = vmatprep.subr.mxu0 0.0
    %1392 = vmatpush1.msra.mxu0 0.0
    %1393 = vmatprep.subr.mxu0 0.0
    %1394 = vmatpush1.msra.mxu0 0.0
    %1395 = vmatprep.subr.mxu0 0.0
    %1396 = vmatpush1.msra.mxu0 0.0
    %1397 = vmatprep.mubr.f32.mxu0 0.0
    %v1398 = vand.u32 %v1011, 4294901760
    %v1399 = vsub.f32 %v1011, %v1398
    %1400 = vmatmul.mubr.f32.gmra.mrb[0].mxu0 %v1399
    %v1401 = vpop.f32.mrb[0].mxu0
    %v1402 = vadd.f32 %v1280, %v1401
    %v1403 = vpop.f32.mrb[0].mxu0
    %1404 = vmatprep.mubr.f32.mxu0 0.0
    %v1405 = vand.u32 %v1014, 4294901760
    %v1406 = vsub.f32 %v1014, %v1405
    %1407 = vmatmul.mubr.f32.gmra.mrb[0].mxu0 %v1406
    %v1408 = vpop.f32.mrb[0].mxu0
    %v1409 = vadd.f32 %v1286, %v1408
    %v1410 = vpop.f32.mrb[0].mxu0
    %1411 = vmatprep.mubr.f32.mxu0 0.0
    %v1412 = vand.u32 %v1017, 4294901760
    %v1413 = vsub.f32 %v1017, %v1412
    %1414 = vmatmul.mubr.f32.gmra.mrb[0].mxu0 %v1413
    %v1415 = vpop.f32.mrb[0].mxu0
    %v1416 = vadd.f32 %v1292, %v1415
    %v1417 = vpop.f32.mrb[0].mxu0
    %1418 = vmatprep.mubr.f32.mxu0 0.0
    %v1419 = vand.u32 %v1020, 4294901760
    %v1420 = vsub.f32 %v1020, %v1419
    %1421 = vmatmul.mubr.f32.gmra.mrb[0].mxu0 %v1420
    %v1422 = vpop.f32.mrb[0].mxu0
    %v1423 = vadd.f32 %v1298, %v1422
    %v1424 = vpop.f32.mrb[0].mxu0
    %1425 = vmatprep.mubr.f32.mxu0 0.0
    %v1426 = vand.u32 %v1023, 4294901760
    %v1427 = vsub.f32 %v1023, %v1426
    %1428 = vmatmul.mubr.f32.gmra.mrb[0].mxu0 %v1427
    %v1429 = vpop.f32.mrb[0].mxu0
    %v1430 = vadd.f32 %v1304, %v1429
    %v1431 = vpop.f32.mrb[0].mxu0
    %1432 = vmatprep.mubr.f32.mxu0 0.0
    %v1433 = vand.u32 %v1026, 4294901760
    %v1434 = vsub.f32 %v1026, %v1433
    %1435 = vmatmul.mubr.f32.gmra.mrb[0].mxu0 %v1434
    %v1436 = vpop.f32.mrb[0].mxu0
    %v1437 = vadd.f32 %v1310, %v1436
    %v1438 = vpop.f32.mrb[0].mxu0
    %1439 = vmatprep.mubr.f32.mxu0 0.0
    %v1440 = vand.u32 %v1029, 4294901760
    %v1441 = vsub.f32 %v1029, %v1440
    %1442 = vmatmul.mubr.f32.gmra.mrb[0].mxu0 %v1441
    %v1443 = vpop.f32.mrb[0].mxu0
    %v1444 = vadd.f32 %v1316, %v1443
    %v1445 = vpop.f32.mrb[0].mxu0
    %1446 = vdwg.mxu0
    %1447 = vmatprep.subr.mxu0 0.0
    %v1448 = vand.u32 %v953, 4294901760
    %1449 = vmatpush1.msra.mxu0 %v1448
    %1450 = vmatprep.subr.mxu0 0.0
    %v1451 = vand.u32 %v954, 4294901760
    %1452 = vmatpush1.msra.mxu0 %v1451
    %1453 = vmatprep.subr.mxu0 0.0
    %v1454 = vand.u32 %v955, 4294901760
    %1455 = vmatpush1.msra.mxu0 %v1454
    %1456 = vmatprep.subr.mxu0 0.0
    %v1457 = vand.u32 %v956, 4294901760
    %1458 = vmatpush1.msra.mxu0 %v1457
    %1459 = vmatprep.subr.mxu0 0.0
    %v1460 = vand.u32 %v957, 4294901760
    %1461 = vmatpush1.msra.mxu0 %v1460
    %1462 = vmatprep.subr.mxu0 0.0
    %v1463 = vand.u32 %v958, 4294901760
    %1464 = vmatpush1.msra.mxu0 %v1463
    %1465 = vmatprep.subr.mxu0 0.0
    %v1466 = vand.u32 %v1033, 4294901760
    %1467 = vmatpush1.msra.mxu0 %v1466
    %1468 = vmatprep.subr.mxu0 0.0
    %1469 = vmatpush1.msra.mxu0 0.0
    %1470 = vmatprep.subr.mxu0 0.0
    %1471 = vmatpush1.msra.mxu0 0.0
    %1472 = vmatprep.subr.mxu0 0.0
    %1473 = vmatpush1.msra.mxu0 0.0
    %1474 = vmatprep.subr.mxu0 0.0
    %1475 = vmatpush1.msra.mxu0 0.0
    %1476 = vmatprep.subr.mxu0 0.0
    %1477 = vmatpush1.msra.mxu0 0.0
    %1478 = vmatprep.subr.mxu0 0.0
    %1479 = vmatpush1.msra.mxu0 0.0
    %1480 = vmatprep.subr.mxu0 0.0
    %1481 = vmatpush1.msra.mxu0 0.0
    %1482 = vmatprep.subr.mxu0 0.0
    %1483 = vmatpush1.msra.mxu0 0.0
    %1484 = vmatprep.subr.mxu0 0.0
    %1485 = vmatpush1.msra.mxu0 0.0
    %1486 = vmatprep.subr.mxu0 0.0
    %1487 = vmatpush1.msra.mxu0 0.0
    %1488 = vmatprep.subr.mxu0 0.0
    %1489 = vmatpush1.msra.mxu0 0.0
    %1490 = vmatprep.subr.mxu0 0.0
    %1491 = vmatpush1.msra.mxu0 0.0
    %1492 = vmatprep.subr.mxu0 0.0
    %1493 = vmatpush1.msra.mxu0 0.0
    %1494 = vmatprep.subr.mxu0 0.0
    %1495 = vmatpush1.msra.mxu0 0.0
    %1496 = vmatprep.subr.mxu0 0.0
    %1497 = vmatpush1.msra.mxu0 0.0
    %1498 = vmatprep.subr.mxu0 0.0
    %1499 = vmatpush1.msra.mxu0 0.0
    %1500 = vmatprep.subr.mxu0 0.0
    %1501 = vmatpush1.msra.mxu0 0.0
    %1502 = vmatprep.subr.mxu0 0.0
    %1503 = vmatpush1.msra.mxu0 0.0
    %1504 = vmatprep.subr.mxu0 0.0
    %1505 = vmatpush1.msra.mxu0 0.0
    %1506 = vmatprep.subr.mxu0 0.0
    %1507 = vmatpush1.msra.mxu0 0.0
    %1508 = vmatprep.subr.mxu0 0.0
    %1509 = vmatpush1.msra.mxu0 0.0
    %1510 = vmatprep.subr.mxu0 0.0
    %1511 = vmatpush1.msra.mxu0 0.0
    %1512 = vmatprep.subr.mxu0 0.0
    %1513 = vmatpush1.msra.mxu0 0.0
    %1514 = vmatprep.subr.mxu0 0.0
    %1515 = vmatpush1.msra.mxu0 0.0
    %1516 = vmatprep.subr.mxu0 0.0
    %1517 = vmatpush1.msra.mxu0 0.0
    %1518 = vmatprep.mubr.f32.mxu0 0.0
    %v1519 = vand.u32 %v1011, 4294901760
    %v1520 = vsub.f32 %v1011, %v1519
    %v1521 = vand.u32 %v1520, 4294901760
    %1522 = vmatmul.mubr.f32.gmra.mrb[0].mxu0 %v1521
    %v1523 = vpop.f32.mrb[0].mxu0
    %v1524 = vadd.f32 %v1402, %v1523
    %v1525 = vpop.f32.mrb[0].mxu0
    %1526 = vmatprep.mubr.f32.mxu0 0.0
    %v1527 = vand.u32 %v1014, 4294901760
    %v1528 = vsub.f32 %v1014, %v1527
    %v1529 = vand.u32 %v1528, 4294901760
    %1530 = vmatmul.mubr.f32.gmra.mrb[0].mxu0 %v1529
    %v1531 = vpop.f32.mrb[0].mxu0
    %v1532 = vadd.f32 %v1409, %v1531
    %v1533 = vpop.f32.mrb[0].mxu0
    %1534 = vmatprep.mubr.f32.mxu0 0.0
    %v1535 = vand.u32 %v1017, 4294901760
    %v1536 = vsub.f32 %v1017, %v1535
    %v1537 = vand.u32 %v1536, 4294901760
    %1538 = vmatmul.mubr.f32.gmra.mrb[0].mxu0 %v1537
    %v1539 = vpop.f32.mrb[0].mxu0
    %v1540 = vadd.f32 %v1416, %v1539
    %v1541 = vpop.f32.mrb[0].mxu0
    %1542 = vmatprep.mubr.f32.mxu0 0.0
    %v1543 = vand.u32 %v1020, 4294901760
    %v1544 = vsub.f32 %v1020, %v1543
    %v1545 = vand.u32 %v1544, 4294901760
    %1546 = vmatmul.mubr.f32.gmra.mrb[0].mxu0 %v1545
    %v1547 = vpop.f32.mrb[0].mxu0
    %v1548 = vadd.f32 %v1423, %v1547
    %v1549 = vpop.f32.mrb[0].mxu0
    %1550 = vmatprep.mubr.f32.mxu0 0.0
    %v1551 = vand.u32 %v1023, 4294901760
    %v1552 = vsub.f32 %v1023, %v1551
    %v1553 = vand.u32 %v1552, 4294901760
    %1554 = vmatmul.mubr.f32.gmra.mrb[0].mxu0 %v1553
    %v1555 = vpop.f32.mrb[0].mxu0
    %v1556 = vadd.f32 %v1430, %v1555
    %v1557 = vpop.f32.mrb[0].mxu0
    %1558 = vmatprep.mubr.f32.mxu0 0.0
    %v1559 = vand.u32 %v1026, 4294901760
    %v1560 = vsub.f32 %v1026, %v1559
    %v1561 = vand.u32 %v1560, 4294901760
    %1562 = vmatmul.mubr.f32.gmra.mrb[0].mxu0 %v1561
    %v1563 = vpop.f32.mrb[0].mxu0
    %v1564 = vadd.f32 %v1437, %v1563
    %v1565 = vpop.f32.mrb[0].mxu0
    %1566 = vmatprep.mubr.f32.mxu0 0.0
    %v1567 = vand.u32 %v1029, 4294901760
    %v1568 = vsub.f32 %v1029, %v1567
    %v1569 = vand.u32 %v1568, 4294901760
    %1570 = vmatmul.mubr.f32.gmra.mrb[0].mxu0 %v1569
    %v1571 = vpop.f32.mrb[0].mxu0
    %v1572 = vadd.f32 %v1444, %v1571
    %v1573 = vpop.f32.mrb[0].mxu0
    %1574 = vdwg.mxu0
    %1575 = vmatprep.subr.mxu0 0.0
    %v1576 = vand.u32 %v953, 4294901760
    %v1577 = vsub.f32 %v953, %v1576
    %v1578 = vand.u32 %v1577, 4294901760
    %1579 = vmatpush1.msra.mxu0 %v1578
    %1580 = vmatprep.subr.mxu0 0.0
    %v1581 = vand.u32 %v954, 4294901760
    %v1582 = vsub.f32 %v954, %v1581
    %v1583 = vand.u32 %v1582, 4294901760
    %1584 = vmatpush1.msra.mxu0 %v1583
    %1585 = vmatprep.subr.mxu0 0.0
    %v1586 = vand.u32 %v955, 4294901760
    %v1587 = vsub.f32 %v955, %v1586
    %v1588 = vand.u32 %v1587, 4294901760
    %1589 = vmatpush1.msra.mxu0 %v1588
    %1590 = vmatprep.subr.mxu0 0.0
    %v1591 = vand.u32 %v956, 4294901760
    %v1592 = vsub.f32 %v956, %v1591
    %v1593 = vand.u32 %v1592, 4294901760
    %1594 = vmatpush1.msra.mxu0 %v1593
    %1595 = vmatprep.subr.mxu0 0.0
    %v1596 = vand.u32 %v957, 4294901760
    %v1597 = vsub.f32 %v957, %v1596
    %v1598 = vand.u32 %v1597, 4294901760
    %1599 = vmatpush1.msra.mxu0 %v1598
    %1600 = vmatprep.subr.mxu0 0.0
    %v1601 = vand.u32 %v958, 4294901760
    %v1602 = vsub.f32 %v958, %v1601
    %v1603 = vand.u32 %v1602, 4294901760
    %1604 = vmatpush1.msra.mxu0 %v1603
    %1605 = vmatprep.subr.mxu0 0.0
    %v1606 = vand.u32 %v1033, 4294901760
    %v1607 = vsub.f32 %v1033, %v1606
    %v1608 = vand.u32 %v1607, 4294901760
    %1609 = vmatpush1.msra.mxu0 %v1608
    %1610 = vmatprep.subr.mxu0 0.0
    %1611 = vmatpush1.msra.mxu0 0.0
    %1612 = vmatprep.subr.mxu0 0.0
    %1613 = vmatpush1.msra.mxu0 0.0
    %1614 = vmatprep.subr.mxu0 0.0
    %1615 = vmatpush1.msra.mxu0 0.0
    %1616 = vmatprep.subr.mxu0 0.0
    %1617 = vmatpush1.msra.mxu0 0.0
    %1618 = vmatprep.subr.mxu0 0.0
    %1619 = vmatpush1.msra.mxu0 0.0
    %1620 = vmatprep.subr.mxu0 0.0
    %1621 = vmatpush1.msra.mxu0 0.0
    %1622 = vmatprep.subr.mxu0 0.0
    %1623 = vmatpush1.msra.mxu0 0.0
    %1624 = vmatprep.subr.mxu0 0.0
    %1625 = vmatpush1.msra.mxu0 0.0
    %1626 = vmatprep.subr.mxu0 0.0
    %1627 = vmatpush1.msra.mxu0 0.0
    %1628 = vmatprep.subr.mxu0 0.0
    %1629 = vmatpush1.msra.mxu0 0.0
    %1630 = vmatprep.subr.mxu0 0.0
    %1631 = vmatpush1.msra.mxu0 0.0
    %1632 = vmatprep.subr.mxu0 0.0
    %1633 = vmatpush1.msra.mxu0 0.0
    %1634 = vmatprep.subr.mxu0 0.0
    %1635 = vmatpush1.msra.mxu0 0.0
    %1636 = vmatprep.subr.mxu0 0.0
    %1637 = vmatpush1.msra.mxu0 0.0
    %1638 = vmatprep.subr.mxu0 0.0
    %1639 = vmatpush1.msra.mxu0 0.0
    %1640 = vmatprep.subr.mxu0 0.0
    %1641 = vmatpush1.msra.mxu0 0.0
    %1642 = vmatprep.subr.mxu0 0.0
    %1643 = vmatpush1.msra.mxu0 0.0
    %1644 = vmatprep.subr.mxu0 0.0
    %1645 = vmatpush1.msra.mxu0 0.0
    %1646 = vmatprep.subr.mxu0 0.0
    %1647 = vmatpush1.msra.mxu0 0.0
    %1648 = vmatprep.subr.mxu0 0.0
    %1649 = vmatpush1.msra.mxu0 0.0
    %1650 = vmatprep.subr.mxu0 0.0
    %1651 = vmatpush1.msra.mxu0 0.0
    %1652 = vmatprep.subr.mxu0 0.0
    %1653 = vmatpush1.msra.mxu0 0.0
    %1654 = vmatprep.subr.mxu0 0.0
    %1655 = vmatpush1.msra.mxu0 0.0
    %1656 = vmatprep.subr.mxu0 0.0
    %1657 = vmatpush1.msra.mxu0 0.0
    %1658 = vmatprep.subr.mxu0 0.0
    %1659 = vmatpush1.msra.mxu0 0.0
    %1660 = vmatprep.mubr.f32.mxu0 0.0
    %v1661 = vand.u32 %v1011, 4294901760
    %1662 = vmatmul.mubr.f32.gmra.mrb[0].mxu0 %v1661
    %v1663 = vpop.f32.mrb[0].mxu0
    %v1664 = vadd.f32 %v1524, %v1663
    %v1665 = vpop.f32.mrb[0].mxu0
    %1666 = vmatprep.mubr.f32.mxu0 0.0
    %v1667 = vand.u32 %v1014, 4294901760
    %1668 = vmatmul.mubr.f32.gmra.mrb[0].mxu0 %v1667
    %v1669 = vpop.f32.mrb[0].mxu0
    %v1670 = vadd.f32 %v1532, %v1669
    %v1671 = vpop.f32.mrb[0].mxu0
    %1672 = vmatprep.mubr.f32.mxu0 0.0
    %v1673 = vand.u32 %v1017, 4294901760
    %1674 = vmatmul.mubr.f32.gmra.mrb[0].mxu0 %v1673
    %v1675 = vpop.f32.mrb[0].mxu0
    %v1676 = vadd.f32 %v1540, %v1675
    %v1677 = vpop.f32.mrb[0].mxu0
    %1678 = vmatprep.mubr.f32.mxu0 0.0
    %v1679 = vand.u32 %v1020, 4294901760
    %1680 = vmatmul.mubr.f32.gmra.mrb[0].mxu0 %v1679
    %v1681 = vpop.f32.mrb[0].mxu0
    %v1682 = vadd.f32 %v1548, %v1681
    %v1683 = vpop.f32.mrb[0].mxu0
    %1684 = vmatprep.mubr.f32.mxu0 0.0
    %v1685 = vand.u32 %v1023, 4294901760
    %1686 = vmatmul.mubr.f32.gmra.mrb[0].mxu0 %v1685
    %v1687 = vpop.f32.mrb[0].mxu0
    %v1688 = vadd.f32 %v1556, %v1687
    %v1689 = vpop.f32.mrb[0].mxu0
    %1690 = vmatprep.mubr.f32.mxu0 0.0
    %v1691 = vand.u32 %v1026, 4294901760
    %1692 = vmatmul.mubr.f32.gmra.mrb[0].mxu0 %v1691
    %v1693 = vpop.f32.mrb[0].mxu0
    %v1694 = vadd.f32 %v1564, %v1693
    %v1695 = vpop.f32.mrb[0].mxu0
    %1696 = vmatprep.mubr.f32.mxu0 0.0
    %v1697 = vand.u32 %v1029, 4294901760
    %1698 = vmatmul.mubr.f32.gmra.mrb[0].mxu0 %v1697
    %v1699 = vpop.f32.mrb[0].mxu0
    %v1700 = vadd.f32 %v1572, %v1699
    %v1701 = vpop.f32.mrb[0].mxu0
    %1702 = vdwg.mxu0
    %1703 = vmatprep.subr.mxu0 0.0
    %v1704 = vand.u32 %v953, 4294901760
    %1705 = vmatpush1.msra.mxu0 %v1704
    %1706 = vmatprep.subr.mxu0 0.0
    %v1707 = vand.u32 %v954, 4294901760
    %1708 = vmatpush1.msra.mxu0 %v1707
    %1709 = vmatprep.subr.mxu0 0.0
    %v1710 = vand.u32 %v955, 4294901760
    %1711 = vmatpush1.msra.mxu0 %v1710
    %1712 = vmatprep.subr.mxu0 0.0
    %v1713 = vand.u32 %v956, 4294901760
    %1714 = vmatpush1.msra.mxu0 %v1713
    %1715 = vmatprep.subr.mxu0 0.0
    %v1716 = vand.u32 %v957, 4294901760
    %1717 = vmatpush1.msra.mxu0 %v1716
    %1718 = vmatprep.subr.mxu0 0.0
    %v1719 = vand.u32 %v958, 4294901760
    %1720 = vmatpush1.msra.mxu0 %v1719
    %1721 = vmatprep.subr.mxu0 0.0
    %v1722 = vand.u32 %v1033, 4294901760
    %1723 = vmatpush1.msra.mxu0 %v1722
    %1724 = vmatprep.subr.mxu0 0.0
    %1725 = vmatpush1.msra.mxu0 0.0
    %1726 = vmatprep.subr.mxu0 0.0
    %1727 = vmatpush1.msra.mxu0 0.0
    %1728 = vmatprep.subr.mxu0 0.0
    %1729 = vmatpush1.msra.mxu0 0.0
    %1730 = vmatprep.subr.mxu0 0.0
    %1731 = vmatpush1.msra.mxu0 0.0
    %1732 = vmatprep.subr.mxu0 0.0
    %1733 = vmatpush1.msra.mxu0 0.0
    %1734 = vmatprep.subr.mxu0 0.0
    %1735 = vmatpush1.msra.mxu0 0.0
    %1736 = vmatprep.subr.mxu0 0.0
    %1737 = vmatpush1.msra.mxu0 0.0
    %1738 = vmatprep.subr.mxu0 0.0
    %1739 = vmatpush1.msra.mxu0 0.0
    %1740 = vmatprep.subr.mxu0 0.0
    %1741 = vmatpush1.msra.mxu0 0.0
    %1742 = vmatprep.subr.mxu0 0.0
    %1743 = vmatpush1.msra.mxu0 0.0
    %1744 = vmatprep.subr.mxu0 0.0
    %1745 = vmatpush1.msra.mxu0 0.0
    %1746 = vmatprep.subr.mxu0 0.0
    %1747 = vmatpush1.msra.mxu0 0.0
    %1748 = vmatprep.subr.mxu0 0.0
    %1749 = vmatpush1.msra.mxu0 0.0
    %1750 = vmatprep.subr.mxu0 0.0
    %1751 = vmatpush1.msra.mxu0 0.0
    %1752 = vmatprep.subr.mxu0 0.0
    %1753 = vmatpush1.msra.mxu0 0.0
    %1754 = vmatprep.subr.mxu0 0.0
    %1755 = vmatpush1.msra.mxu0 0.0
    %1756 = vmatprep.subr.mxu0 0.0
    %1757 = vmatpush1.msra.mxu0 0.0
    %1758 = vmatprep.subr.mxu0 0.0
    %1759 = vmatpush1.msra.mxu0 0.0
    %1760 = vmatprep.subr.mxu0 0.0
    %1761 = vmatpush1.msra.mxu0 0.0
    %1762 = vmatprep.subr.mxu0 0.0
    %1763 = vmatpush1.msra.mxu0 0.0
    %1764 = vmatprep.subr.mxu0 0.0
    %1765 = vmatpush1.msra.mxu0 0.0
    %1766 = vmatprep.subr.mxu0 0.0
    %1767 = vmatpush1.msra.mxu0 0.0
    %1768 = vmatprep.subr.mxu0 0.0
    %1769 = vmatpush1.msra.mxu0 0.0
    %1770 = vmatprep.subr.mxu0 0.0
    %1771 = vmatpush1.msra.mxu0 0.0
    %1772 = vmatprep.subr.mxu0 0.0
    %1773 = vmatpush1.msra.mxu0 0.0
    %1774 = vmatprep.mubr.f32.mxu0 0.0
    %v1775 = vand.u32 %v1011, 4294901760
    %1776 = vmatmul.mubr.f32.gmra.mrb[0].mxu0 %v1775
    %v1777 = vpop.f32.mrb[0].mxu0
    %v1778 = vadd.f32 %v1664, %v1777
    %v1779 = vpop.f32.mrb[0].mxu0
    %1780 = vmatprep.mubr.f32.mxu0 0.0
    %v1781 = vand.u32 %v1014, 4294901760
    %1782 = vmatmul.mubr.f32.gmra.mrb[0].mxu0 %v1781
    %v1783 = vpop.f32.mrb[0].mxu0
    %v1784 = vadd.f32 %v1670, %v1783
    %v1785 = vpop.f32.mrb[0].mxu0
    %1786 = vmatprep.mubr.f32.mxu0 0.0
    %v1787 = vand.u32 %v1017, 4294901760
    %1788 = vmatmul.mubr.f32.gmra.mrb[0].mxu0 %v1787
    %v1789 = vpop.f32.mrb[0].mxu0
    %v1790 = vadd.f32 %v1676, %v1789
    %v1791 = vpop.f32.mrb[0].mxu0
    %1792 = vmatprep.mubr.f32.mxu0 0.0
    %v1793 = vand.u32 %v1020, 4294901760
    %1794 = vmatmul.mubr.f32.gmra.mrb[0].mxu0 %v1793
    %v1795 = vpop.f32.mrb[0].mxu0
    %v1796 = vadd.f32 %v1682, %v1795
    %v1797 = vpop.f32.mrb[0].mxu0
    %1798 = vmatprep.mubr.f32.mxu0 0.0
    %v1799 = vand.u32 %v1023, 4294901760
    %1800 = vmatmul.mubr.f32.gmra.mrb[0].mxu0 %v1799
    %v1801 = vpop.f32.mrb[0].mxu0
    %v1802 = vadd.f32 %v1688, %v1801
    %v1803 = vpop.f32.mrb[0].mxu0
    %1804 = vmatprep.mubr.f32.mxu0 0.0
    %v1805 = vand.u32 %v1026, 4294901760
    %1806 = vmatmul.mubr.f32.gmra.mrb[0].mxu0 %v1805
    %v1807 = vpop.f32.mrb[0].mxu0
    %v1808 = vadd.f32 %v1694, %v1807
    %v1809 = vpop.f32.mrb[0].mxu0
    %1810 = vmatprep.mubr.f32.mxu0 0.0
    %v1811 = vand.u32 %v1029, 4294901760
    %1812 = vmatmul.mubr.f32.gmra.mrb[0].mxu0 %v1811
    %v1813 = vpop.f32.mrb[0].mxu0
    %v1814 = vadd.f32 %v1700, %v1813
    %v1815 = vpop.f32.mrb[0].mxu0
    %1816 = vdwg.mxu0
    %v1817 = vmul.f32 %v1778, 0.5
    %v1818 = vmul.f32 %v1784, 0.5
    %v1819 = vmul.f32 %v1790, 0.5
    %v1820 = vmul.f32 %v1796, 0.5
    %v1821 = vmul.f32 %v1802, 0.5
    %v1822 = vmul.f32 %v1808, 0.5
    %v1823 = vmul.f32 %v1814, 0.5
    %v1824 = vtanh.pop %v1817
    %v1825 = vtanh.pop %v1818
    %v1826 = vtanh.pop %v1819
    %v1827 = vtanh.pop %v1820
    %v1828 = vtanh.pop %v1821
    %v1829 = vtanh.pop %v1822
    %v1830 = vtanh.pop %v1823
    %v1831 = vmul.f32 %v1824, 0.5
    %v1832 = vmul.f32 %v1825, 0.5
    %v1833 = vmul.f32 %v1826, 0.5
    %v1834 = vmul.f32 %v1827, 0.5
    %v1835 = vmul.f32 %v1828, 0.5
    %v1836 = vmul.f32 %v1829, 0.5
    %v1837 = vmul.f32 %v1830, 0.5
    %v1838 = vadd.f32 %v1831, 0.5
    %v1839 = vadd.f32 %v1832, 0.5
    %v1840 = vadd.f32 %v1833, 0.5
    %v1841 = vadd.f32 %v1834, 0.5
    %v1842 = vadd.f32 %v1835, 0.5
    %v1843 = vadd.f32 %v1836, 0.5
    %v1844 = vadd.f32 %v1837, 0.5
    %v1845 = vld [vmem:[%s7] sm:$0xff]
    %v1846 = vld [vmem:[%s7 + $0x8] sm:$0xff]
    %v1847 = vld [vmem:[%s7 + $0x10] sm:$0xff]
    %v1848 = vld [vmem:[%s7 + $0x18] sm:$0xff]
    %v1849 = vld [vmem:[%s7 + $0x20] sm:$0xff]
    %v1850 = vld [vmem:[%s7 + $0x28] sm:$0xff]
    %v1851 = vld [vmem:[%s7 + $0x30] sm:$0x3]
    %1853 = vset.pattern.permute.xlu0 0
    %1854 = vperm.xlu0 %1853, %v1845
    %v1855 = vpop.permute.xlu0 %1854
    %1858 = vset.pattern.permute.xlu0 0
    %1859 = vperm.xlu0 %1858, %v1846
    %v1860 = vpop.permute.xlu0 %1859
    %1863 = vset.pattern.permute.xlu0 0
    %1864 = vperm.xlu0 %1863, %v1847
    %v1865 = vpop.permute.xlu0 %1864
    %1868 = vset.pattern.permute.xlu0 0
    %1869 = vperm.xlu0 %1868, %v1848
    %v1870 = vpop.permute.xlu0 %1869
    %1873 = vset.pattern.permute.xlu0 0
    %1874 = vperm.xlu0 %1873, %v1849
    %v1875 = vpop.permute.xlu0 %1874
    %1878 = vset.pattern.permute.xlu0 0
    %1879 = vperm.xlu0 %1878, %v1850
    %v1880 = vpop.permute.xlu0 %1879
    %1883 = vset.pattern.permute.xlu0 0
    %1884 = vperm.xlu0 %1883, %v1851
    %v1885 = vpop.permute.xlu0 %1884
    %v1887 = vmul.f32 %v1855, %v1838
    %v1888 = vmul.f32 %v1860, %v1839
    %v1889 = vmul.f32 %v1865, %v1840
    %v1890 = vmul.f32 %v1870, %v1841
    %v1891 = vmul.f32 %v1875, %v1842
    %v1892 = vmul.f32 %v1880, %v1843
    %v1893 = vmul.f32 %v1885, %v1844
    %v1894 = vadd.f32 %v1887, %v1888
    %v1895 = vadd.f32 %v1894, %v1889
    %v1896 = vadd.f32 %v1895, %v1890
    %v1897 = vadd.f32 %v1896, %v1891
    %v1898 = vadd.f32 %v1897, %v1892
    %v1899 = vsel %vm1031, %v1893, 0.0
    %v1900 = vadd.f32 %v1898, %v1899
    %v1901 = vrot.slane %v1900, 4
    %v1902 = vadd.f32 %v1900, %v1901
    %v1903 = vrot.slane %v1902, 2
    %v1904 = vadd.f32 %v1902, %v1903
    %v1905 = vrot.slane %v1904, 1
    %v1906 = vadd.f32 %v1904, %v1905
    %v1907 = vld [vmem:[#allocation2] sm:$0x1]
    %1909 = vset.pattern.permute.xlu0 0
    %1910 = vperm.xlu0 %1909, %v1907
    %v1911 = vpop.permute.xlu0 %1910
    %v1913 = vlaneseq
    %v1914 = vshrl.u32 %v1913, 7
    %v1915 = vsub.s32 0, %v1914
    %v1916 = vrot.slane %v1911, %v1915
    %v1917 = vadd.f32 %v1906, %v1916
    %1918 = vst [vmem:[#allocation3] sm:$0x1] %v1917
    // Predicated region
    $region38: #{tpu_custom_call.1} parent=1 // pred_check
      _
    $region39: #{tpu_custom_call.1} parent=1 // pred_check_branch
      %1920 = sbr.rel (0) target = $region41
    $region40: #{tpu_custom_call.1} parent=1 // pred_region
      %s1922 = ssub.s32 16, 16
      %1923 = vsyncadd [#allocation4], %s1922
      %s1925 = sshll.u32 [#allocation3], 4
      %s1926 = int_to_ptr.vmem [resolvable:$true] %s1925
      %1928 = dma.vmem_to_hbm [thread:$0]  %s1926, 16, %s9, [#allocation4]
    $region41: #{tpu_custom_call.1} parent=1 // pred_fallthru
      _
    // Predicated region
    $region42: #{tpu_custom_call.1} parent=1 // pred_check
      _
    $region43: #{tpu_custom_call.1} parent=1 // pred_check_branch
      %1930 = sbr.rel (0) target = $region45
    $region44: #{tpu_custom_call.1} parent=1 // pred_region
      %1931 = dma.done [#allocation4], 16
    $region45: #{tpu_custom_call.1} parent=1 // pred_fallthru
      _
    %1932 = vsyncpa [#allocation4], 1

</llo_original>
